<compile_context>
chip_gen: v6e
topology: v6e:2x2x1
jax: 0.10.0
libtpu: 0.0.40
codegen_flags: <defaults>
</compile_context>

<pallas_src>
import jax
import jax.numpy as jnp
from jax.experimental import pallas as pl
from jax.experimental.pallas import tpu as pltpu


def _cond_kernel(units_ref,   # VMEM (1, tm, n_unit)   bf16 (matmul operand)
                 f0_ref,      # VMEM (1, tm, 1)        f32
                 vol_ref,     # VMEM (1, tm, 1)        f32
                 spk_ref,     # VMEM (1, 1, n_hidden)  f32  pre-gathered speaker row
                 wu_ref,      # VMEM (n_unit, n_hidden)      unit_embed.weight.T (bf16)
                 fv_ref,      # VMEM (2, n_hidden)           [f0_embed.w.T ; volume_embed.w.T]
                 b_ref,       # VMEM (1, n_hidden)           unit_b + f0_b + vol_b
                 out_ref):    # VMEM (1, tm, n_hidden) f32
    u = units_ref[0]          # (tm, n_unit)
    f0 = f0_ref[0]            # (tm, 1)
    vol = vol_ref[0]          # (tm, 1)

    # unit_embed: Linear(n_unit, n_hidden) on the MXU, f32 accumulation.
    x = jnp.dot(u, wu_ref[...], preferred_element_type=jnp.float32)
    x = x + b_ref[...]                                        # fused biases
    # f0_embed / volume_embed: Linear(1, n_hidden) == rank-1 broadcast mul-add (VPU).
    x = x + jnp.log(1.0 + f0 * (1.0 / 700.0)) * fv_ref[0:1, :]
    x = x + vol * fv_ref[1:2, :]
    # spk_embed row, broadcast over the frame tile.
    x = x + spk_ref[0]
    out_ref[0] = x.astype(out_ref.dtype)


def _pick_frame_tile(T, max_tile):
    # Biggest frame tile that divides T (and keeps the sublane dim a multiple of 8).
    for tm in (max_tile, 256, 128, 64, 32, 16, 8):
        if tm <= max_tile and T % tm == 0:
            return tm
    return T  # fallback: whole-T block (equal to full dim is always legal)


def unit2mel_condition(units, f0, volume, spk_id, params, *, max_frame_tile=256):
    """Fused conditioning of Unit2Mel.forward (n_spk > 1, no mix / encoder / aug)."""
    B, T, n_unit = units.shape
    n_hidden = params["unit_w"].shape[1]
    n_spk = params["spk_table"].shape[0]

    tm = _pick_frame_tile(T, max_frame_tile)   # use max_frame_tile=128 on v5e
    grid = (B, T // tm)

    # Tiny per-batch row gather of the speaker embedding (clamped -> no OOB reads).
    idx = jnp.clip(spk_id[:, 0].astype(jnp.int32) - 1, 0, n_spk - 1)
    spk_rows = params["spk_table"][idx][:, None, :]            # (B, 1, n_hidden)

    # bf16 matmul operands (weights already stored bf16); f32 accumulation in-kernel.
    units = units.astype(params["unit_w"].dtype)

    return pl.pallas_call(
        _cond_kernel,
        out_shape=jax.ShapeDtypeStruct((B, T, n_hidden), jnp.float32),
        grid_spec=pltpu.PrefetchScalarGridSpec(
            num_scalar_prefetch=0,
            grid=grid,
            in_specs=[
                pl.BlockSpec((1, tm, n_unit),    lambda b, m: (b, m, 0)),
                pl.BlockSpec((1, tm, 1),         lambda b, m: (b, m, 0)),
                pl.BlockSpec((1, tm, 1),         lambda b, m: (b, m, 0)),
                pl.BlockSpec((1, 1, n_hidden),   lambda b, m: (b, 0, 0)),
                pl.BlockSpec((n_unit, n_hidden), lambda b, m: (0, 0)),
                pl.BlockSpec((2, n_hidden),      lambda b, m: (0, 0)),
                pl.BlockSpec((1, n_hidden),      lambda b, m: (0, 0)),
            ],
            out_specs=pl.BlockSpec((1, tm, n_hidden), lambda b, m: (b, m, 0)),
        ),
        compiler_params=pltpu.CompilerParams(
            # Every grid step is independent -> shard across both TCs on v7x.
            dimension_semantics=("parallel", "parallel")),
    )(units, f0, volume, spk_rows,
      params["unit_w"], params["fv_w"], params["bias"])


def make_params(key, n_unit, n_hidden, n_spk, matmul_dtype=jnp.bfloat16):
    ks = jax.random.split(key, 7)
    scale = 0.1
    unit_w = scale * jax.random.normal(ks[0], (n_unit, n_hidden), jnp.float32)
    unit_b = scale * jax.random.normal(ks[1], (1, n_hidden), jnp.float32)
    f0_w   = scale * jax.random.normal(ks[2], (1, n_hidden), jnp.float32)
    f0_b   = scale * jax.random.normal(ks[3], (1, n_hidden), jnp.float32)
    vol_w  = scale * jax.random.normal(ks[4], (1, n_hidden), jnp.float32)
    vol_b  = scale * jax.random.normal(ks[5], (1, n_hidden), jnp.float32)
    spk_t  = scale * jax.random.normal(ks[6], (n_spk, n_hidden), jnp.float32)
    # One-time kernel-ready weight prep:
    #   - (in, out) layout (PyTorch Linear stores (out, in))
    #   - bf16 matmul weight, three biases pre-summed, rank-1 weights stacked.
    return {
        "unit_w":    unit_w.astype(matmul_dtype),              # (n_unit, n_hidden) bf16
        "fv_w":      jnp.concatenate([f0_w, vol_w], axis=0),   # (2, n_hidden) f32
        "bias":      unit_b + f0_b + vol_b,                    # (1, n_hidden) f32
        "spk_table": spk_t,                                    # (n_spk, n_hidden) f32
    }


def reference(units, f0, volume, spk_id, p):
    u = units.astype(jnp.float32)
    w = p["unit_w"].astype(jnp.float32)
    x = u @ w + p["bias"]
    x = x + jnp.log(1.0 + f0 / 700.0) * p["fv_w"][0:1]
    x = x + volume * p["fv_w"][1:2]
    n_spk = p["spk_table"].shape[0]
    idx = jnp.clip(spk_id[:, 0].astype(jnp.int32) - 1, 0, n_spk - 1)
    x = x + p["spk_table"][idx][:, None, :]
    return x


if __name__ == "__main__":
    B, T = 2, 512           # batch, n_frames
    n_unit = 128            # input_channel (lane-aligned demo size)
    n_hidden = 256          # module default -> lane-dense output
    n_spk = 4

    key = jax.random.PRNGKey(0)
    k_u, k_f, k_v, k_s, k_p = jax.random.split(key, 5)

    units = jax.random.normal(k_u, (B, T, n_unit), jnp.float32).astype(jnp.bfloat16)
    f0 = 100.0 + 300.0 * jax.random.uniform(k_f, (B, T, 1), jnp.float32)   # Hz, > 0
    volume = jax.random.uniform(k_v, (B, T, 1), jnp.float32)
    spk_id = jax.random.randint(k_s, (B, 1), 1, n_spk + 1, jnp.int32)      # 1-based, like PyTorch
    params = make_params(k_p, n_unit, n_hidden, n_spk)

    out = unit2mel_condition(units, f0, volume, spk_id, params)
    out = jax.block_until_ready(out)

    ref = reference(units, f0, volume, spk_id, params)
    assert out.shape == (B, T, n_hidden), out.shape
    err = float(jnp.abs(out - ref).max())
    assert jnp.allclose(out, ref, atol=1e-3, rtol=1e-3), err

    print("KERNEL_OK")
</pallas_src>

<mosaic_0001>
module attributes {stable_mosaic.version = 11 : i64} {
  func.func @_cond_kernel(%arg0: i32, %arg1: i32, %arg2: memref<1x256x128xbf16, #tpu.memory_space<vmem>>, %arg3: memref<1x256x1xf32, #tpu.memory_space<vmem>>, %arg4: memref<1x256x1xf32, #tpu.memory_space<vmem>>, %arg5: memref<1x1x256xf32, #tpu.memory_space<vmem>>, %arg6: memref<128x256xbf16, #tpu.memory_space<vmem>>, %arg7: memref<2x256xf32, #tpu.memory_space<vmem>>, %arg8: memref<1x256xf32, #tpu.memory_space<vmem>>, %arg9: memref<1x256x256xf32, #tpu.memory_space<vmem>>) attributes {dimension_semantics = [#tpu.dimension_semantics<parallel>, #tpu.dimension_semantics<parallel>], iteration_bounds = array<i64: 2, 2>, scalar_prefetch = 0 : i64, scratch_operands = 0 : i64, tpu.core_type = #tpu.core_type<tc>, window_params = [{transform_indices = @transform_0, window_bounds = array<i64: 1, 256, 128>}, {transform_indices = @transform_1, window_bounds = array<i64: 1, 256, 1>}, {transform_indices = @transform_2, window_bounds = array<i64: 1, 256, 1>}, {transform_indices = @transform_3, window_bounds = array<i64: 1, 1, 256>}, {pipeline_mode = #tpu.pipeline_mode<synchronous>, transform_indices = @transform_4, window_bounds = array<i64: 128, 256>}, {pipeline_mode = #tpu.pipeline_mode<synchronous>, transform_indices = @transform_5, window_bounds = array<i64: 2, 256>}, {pipeline_mode = #tpu.pipeline_mode<synchronous>, transform_indices = @transform_6, window_bounds = array<i64: 1, 256>}, {transform_indices = @transform_7, window_bounds = array<i64: 1, 256, 256>}]} {
    %c0 = arith.constant 0 : index
    %c0_0 = arith.constant 0 : index
    %c0_1 = arith.constant 0 : index
    %0 = vector.load %arg2[%c0, %c0_0, %c0_1] : memref<1x256x128xbf16, #tpu.memory_space<vmem>>, vector<1x256x128xbf16>
    %1 = vector.shape_cast %0 : vector<1x256x128xbf16> to vector<256x128xbf16>
    %c0_2 = arith.constant 0 : index
    %c0_3 = arith.constant 0 : index
    %c0_4 = arith.constant 0 : index
    %2 = vector.load %arg3[%c0_2, %c0_3, %c0_4] : memref<1x256x1xf32, #tpu.memory_space<vmem>>, vector<1x256x1xf32>
    %3 = vector.shape_cast %2 : vector<1x256x1xf32> to vector<256x1xf32>
    %c0_5 = arith.constant 0 : index
    %c0_6 = arith.constant 0 : index
    %c0_7 = arith.constant 0 : index
    %4 = vector.load %arg4[%c0_5, %c0_6, %c0_7] : memref<1x256x1xf32, #tpu.memory_space<vmem>>, vector<1x256x1xf32>
    %5 = vector.shape_cast %4 : vector<1x256x1xf32> to vector<256x1xf32>
    %c0_8 = arith.constant 0 : index
    %c0_9 = arith.constant 0 : index
    %6 = vector.load %arg6[%c0_8, %c0_9] : memref<128x256xbf16, #tpu.memory_space<vmem>>, vector<128x256xbf16>
    %cst = arith.constant dense<0.000000e+00> : vector<256x256xf32>
    %7 = tpu.matmul %1, %6, %cst {dimension_numbers = #tpu.dot_dimension_numbers<[1], [0], [0], [1], [0, 0, 1, 1], [], []>} : vector<256x128xbf16>, vector<128x256xbf16>, vector<256x256xf32> -> vector<256x256xf32>
    %c0_10 = arith.constant 0 : index
    %c0_11 = arith.constant 0 : index
    %8 = vector.load %arg8[%c0_10, %c0_11] : memref<1x256xf32, #tpu.memory_space<vmem>>, vector<1x256xf32>
    %9 = vector.broadcast %8 : vector<1x256xf32> to vector<256x256xf32>
    %10 = arith.addf %7, %9 : vector<256x256xf32>
    %cst_12 = arith.constant 0.00142857141 : f32
    %11 = vector.broadcast %cst_12 : f32 to vector<256x1xf32>
    %12 = arith.mulf %3, %11 : vector<256x1xf32>
    %cst_13 = arith.constant 1.000000e+00 : f32
    %13 = vector.broadcast %cst_13 : f32 to vector<256x1xf32>
    %14 = arith.addf %13, %12 : vector<256x1xf32>
    %15 = math.log %14 : vector<256x1xf32>
    %c0_14 = arith.constant 0 : index
    %c0_15 = arith.constant 0 : index
    %16 = vector.load %arg7[%c0_14, %c0_15] : memref<2x256xf32, #tpu.memory_space<vmem>>, vector<1x256xf32>
    %17 = vector.broadcast %15 : vector<256x1xf32> to vector<256x256xf32>
    %18 = vector.broadcast %16 : vector<1x256xf32> to vector<256x256xf32>
    %19 = arith.mulf %17, %18 : vector<256x256xf32>
    %20 = arith.addf %10, %19 : vector<256x256xf32>
    %c1 = arith.constant 1 : index
    %c0_16 = arith.constant 0 : index
    %21 = vector.load %arg7[%c1, %c0_16] : memref<2x256xf32, #tpu.memory_space<vmem>>, vector<1x256xf32>
    %22 = vector.broadcast %5 : vector<256x1xf32> to vector<256x256xf32>
    %23 = vector.broadcast %21 : vector<1x256xf32> to vector<256x256xf32>
    %24 = arith.mulf %22, %23 : vector<256x256xf32>
    %25 = arith.addf %20, %24 : vector<256x256xf32>
    %c0_17 = arith.constant 0 : index
    %c0_18 = arith.constant 0 : index
    %c0_19 = arith.constant 0 : index
    %26 = vector.load %arg5[%c0_17, %c0_18, %c0_19] : memref<1x1x256xf32, #tpu.memory_space<vmem>>, vector<1x1x256xf32>
    %27 = vector.shape_cast %26 : vector<1x1x256xf32> to vector<1x256xf32>
    %28 = vector.broadcast %27 : vector<1x256xf32> to vector<256x256xf32>
    %29 = arith.addf %25, %28 : vector<256x256xf32>
    %c0_20 = arith.constant 0 : index
    %c0_21 = arith.constant 0 : index
    %c0_22 = arith.constant 0 : index
    %30 = vector.load %arg9[%c0_20, %c0_21, %c0_22] : memref<1x256x256xf32, #tpu.memory_space<vmem>>, vector<1x256x256xf32>
    %31 = vector.shape_cast %30 : vector<1x256x256xf32> to vector<256x256xf32>
    %32 = vector.shape_cast %29 : vector<256x256xf32> to vector<1x256x256xf32>
    tpu.vector_store %arg9[%c0_20, %c0_21, %c0_22], %32 {strides = array<i32>} : memref<1x256x256xf32, #tpu.memory_space<vmem>>, vector<1x256x256xf32>,
    return
  }
  func.func @transform_0(%arg0: i32, %arg1: i32) -> (i32, i32, i32) {
    %c0_i32 = arith.constant 0 : i32
    %c0_i32_0 = arith.constant 0 : i32
    return %arg0, %arg1, %c0_i32 : i32, i32, i32
  }
  func.func @transform_1(%arg0: i32, %arg1: i32) -> (i32, i32, i32) {
    %c0_i32 = arith.constant 0 : i32
    %c0_i32_0 = arith.constant 0 : i32
    return %arg0, %arg1, %c0_i32 : i32, i32, i32
  }
  func.func @transform_2(%arg0: i32, %arg1: i32) -> (i32, i32, i32) {
    %c0_i32 = arith.constant 0 : i32
    %c0_i32_0 = arith.constant 0 : i32
    return %arg0, %arg1, %c0_i32 : i32, i32, i32
  }
  func.func @transform_3(%arg0: i32, %arg1: i32) -> (i32, i32, i32) {
    %c0_i32 = arith.constant 0 : i32
    %c0_i32_0 = arith.constant 0 : i32
    %c0_i32_1 = arith.constant 0 : i32
    return %arg0, %c0_i32, %c0_i32_0 : i32, i32, i32
  }
  func.func @transform_4(%arg0: i32, %arg1: i32) -> (i32, i32) {
    %c0_i32 = arith.constant 0 : i32
    %c0_i32_0 = arith.constant 0 : i32
    %c0_i32_1 = arith.constant 0 : i32
    return %c0_i32, %c0_i32_0 : i32, i32
  }
  func.func @transform_5(%arg0: i32, %arg1: i32) -> (i32, i32) {
    %c0_i32 = arith.constant 0 : i32
    %c0_i32_0 = arith.constant 0 : i32
    %c0_i32_1 = arith.constant 0 : i32
    return %c0_i32, %c0_i32_0 : i32, i32
  }
  func.func @transform_6(%arg0: i32, %arg1: i32) -> (i32, i32) {
    %c0_i32 = arith.constant 0 : i32
    %c0_i32_0 = arith.constant 0 : i32
    %c0_i32_1 = arith.constant 0 : i32
    return %c0_i32, %c0_i32_0 : i32, i32
  }
  func.func @transform_7(%arg0: i32, %arg1: i32) -> (i32, i32, i32) {
    %c0_i32 = arith.constant 0 : i32
    %c0_i32_0 = arith.constant 0 : i32
    return %arg0, %arg1, %c0_i32 : i32, i32, i32
  }
}

</mosaic_0001>

<llo_original>
// kernel: tpu_custom_call.1
$region0: #{tpu_custom_call.1}
  #allocation0 [shape = 'u32[]', space=smem, size = 0x4, offset = 0x4, fixed_abs, tag = 'smem constant byte address 0x4 - core index']
  #allocation1 [shape = 'u32[144,128]{1,0:T(1,128)}', space=vmem, size = 0x12000, scoped, tag = 'internal scratch']
  %s0 = inlined_call_operand.vmem [shape: bf16[2,512,128], index: 0, kind: input, shape index: {}]
  %s1 = inlined_call_operand.vmem [shape: f32[2,512,1], index: 1, kind: input, shape index: {}]
  %s2 = inlined_call_operand.vmem [shape: f32[2,512,1], index: 2, kind: input, shape index: {}]
  %s3 = inlined_call_operand.vmem [shape: f32[2,1,256], index: 3, kind: input, shape index: {}]
  %s4 = inlined_call_operand.vmem [shape: bf16[128,256], index: 4, kind: input, shape index: {}]
  %s5 = inlined_call_operand.vmem [shape: f32[2,256], index: 5, kind: input, shape index: {}]
  %s6 = inlined_call_operand.vmem [shape: f32[1,256], index: 6, kind: input, shape index: {}]
  %s7 = inlined_call_operand.hbm [shape: f32[2,512,256], index: 7, kind: output, shape index: {}]
  %s8 = sld [smem:[#allocation0]]
  $region61: #{tpu_custom_call.1} parent=0
    _
  %s10 = ssub.s32 1, %s8
  %s11 = scalar_select 0, %s10, %s8
  $region1: #{tpu_custom_call.1} parent=0
    #allocation2 [shape = 'u8[524288]{0}', space=vmem, size = 0x80000, scoped, tag = 'output window, operand 0']
    #allocation3 [shape = 's32[2]{0}', space=sflag, size = 0x8, scoped, tag = 'scoped memory for tpu_custom_call.1']
    %12 = vsyncpa [#allocation3], 0
    %s13 = scalar_lea.sflag [#allocation3], 1
    %14 = vsyncpa %s13, 0
    loop: start=0, step=1, limit=6
    $region2: #{tpu_custom_call.1} parent=1 // loop_pre_header
      _
    $region3: #{tpu_custom_call.1} parent=1 // loop_header
      %s16 = sphi 0, %s20
      %p17 = scmp.ge.s32.totalorder %s16, 6
      %s23 = sphi 0, %s35
      %s24 = sphi 0, %s31
      %s25 = sphi 0, %s23
      %s26 = sphi 0, %s24
      %s27 = sphi 0, %s25
      %s28 = sphi 0, %s26
      %s40 = sphi 0, %s42
      %s43 = sphi 0, %s40
      %s44 = sphi 0, %s43
      %s60 = sphi 0, %s44
      %s68 = sphi 0, %s70
      %s71 = sphi 0, %s68
      %s72 = sphi 0, %s71
      %s88 = sphi 0, %s72
      %s96 = sphi 0, %s98
      %s99 = sphi 0, %s96
      %s100 = sphi 0, %s99
      %s116 = sphi 0, %s100
      %s122 = sphi 0, %s124
      %s125 = sphi 0, %s122
      %s126 = sphi 0, %s125
      %s142 = sphi 0, %s126
      %s146 = sphi 0, %s146
      %s148 = sphi 0, %s146
      %s149 = sphi 0, %s148
      %s163 = sphi 0, %s149
      %s167 = sphi 0, %s167
      %s169 = sphi 0, %s167
      %s170 = sphi 0, %s169
      %s184 = sphi 0, %s170
      %s188 = sphi 0, %s188
      %s190 = sphi 0, %s188
      %s191 = sphi 0, %s190
      %s205 = sphi 0, %s191
      %s213 = sphi 0, %s215
      %s216 = sphi 0, %s213
      %s217 = sphi 0, %s216
      %s233 = sphi 0, %s217
    $region4: #{tpu_custom_call.1} parent=1 // loop_header_branch
      %19 = sbr.rel (%p17) target = $region8
    $region5: #{tpu_custom_call.1} parent=1 // loop_body
      %s21 = ssub.s32 %s16, 1
      %s22 = ssub.s32 %s16, 2
      %s29 = sadd.s32 1, %s24
      %p30 = scmp.ge.s32.totalorder %s29, 2
      %s31 = scalar_select %p30, 0, %s29
      %s32 = sadd.s32 1, %s23
      %s33 = scalar_select %p30, %s32, %s23
      %p34 = scmp.ge.s32.totalorder %s33, 2
      %s35 = scalar_select %p34, 0, %s33
      %s36 = ssub.s32 %s23, %s35
      %s37 = ssub.s32 %s24, %s31
      %s38 = sor.u32 %s36, %s37
      %p39 = scmp.eq.s32.totalorder %s38, 0
      %s41 = sadd.s32 %s40, 1
      %s42 = scalar_select %p39, %s40, %s41
      %p45 = pneg %p39
      %p46 = scmp.eq.s32.totalorder %s16, 3
      %p47 = por %p45, %p46
      %p48 = scmp.ne.s32.totalorder %s40, %s43
      %p49 = scmp.eq.s32.totalorder %s16, 0
      %p50 = por %p48, %p49
      %p51 = scmp.ne.s32.totalorder %s40, %s43
      %p52 = scmp.eq.s32.totalorder %s21, 3
      %p53 = por %p51, %p52
      %p54 = scmp.ne.s32.totalorder %s43, %s44
      %p55 = scmp.eq.s32.totalorder %s21, 0
      %p56 = por %p54, %p55
      %p57 = scmp.ne.s32.totalorder %s43, %s44
      %p58 = scmp.eq.s32.totalorder %s22, 3
      %p59 = por %p57, %p58
      %p61 = scmp.ne.s32.totalorder %s44, %s60
      %p62 = scmp.eq.s32.totalorder %s22, 0
      %p63 = por %p61, %p62
      %s64 = ssub.s32 %s23, %s35
      %s65 = ssub.s32 %s24, %s31
      %s66 = sor.u32 %s64, %s65
      %p67 = scmp.eq.s32.totalorder %s66, 0
      %s69 = sadd.s32 %s68, 1
      %s70 = scalar_select %p67, %s68, %s69
      %p73 = pneg %p67
      %p74 = scmp.eq.s32.totalorder %s16, 3
      %p75 = por %p73, %p74
      %p76 = scmp.ne.s32.totalorder %s68, %s71
      %p77 = scmp.eq.s32.totalorder %s16, 0
      %p78 = por %p76, %p77
      %p79 = scmp.ne.s32.totalorder %s68, %s71
      %p80 = scmp.eq.s32.totalorder %s21, 3
      %p81 = por %p79, %p80
      %p82 = scmp.ne.s32.totalorder %s71, %s72
      %p83 = scmp.eq.s32.totalorder %s21, 0
      %p84 = por %p82, %p83
      %p85 = scmp.ne.s32.totalorder %s71, %s72
      %p86 = scmp.eq.s32.totalorder %s22, 3
      %p87 = por %p85, %p86
      %p89 = scmp.ne.s32.totalorder %s72, %s88
      %p90 = scmp.eq.s32.totalorder %s22, 0
      %p91 = por %p89, %p90
      %s92 = ssub.s32 %s23, %s35
      %s93 = ssub.s32 %s24, %s31
      %s94 = sor.u32 %s92, %s93
      %p95 = scmp.eq.s32.totalorder %s94, 0
      %s97 = sadd.s32 %s96, 1
      %s98 = scalar_select %p95, %s96, %s97
      %p101 = pneg %p95
      %p102 = scmp.eq.s32.totalorder %s16, 3
      %p103 = por %p101, %p102
      %p104 = scmp.ne.s32.totalorder %s96, %s99
      %p105 = scmp.eq.s32.totalorder %s16, 0
      %p106 = por %p104, %p105
      %p107 = scmp.ne.s32.totalorder %s96, %s99
      %p108 = scmp.eq.s32.totalorder %s21, 3
      %p109 = por %p107, %p108
      %p110 = scmp.ne.s32.totalorder %s99, %s100
      %p111 = scmp.eq.s32.totalorder %s21, 0
      %p112 = por %p110, %p111
      %p113 = scmp.ne.s32.totalorder %s99, %s100
      %p114 = scmp.eq.s32.totalorder %s22, 3
      %p115 = por %p113, %p114
      %p117 = scmp.ne.s32.totalorder %s100, %s116
      %p118 = scmp.eq.s32.totalorder %s22, 0
      %p119 = por %p117, %p118
      %s120 = ssub.s32 %s23, %s35
      %p121 = scmp.eq.s32.totalorder %s120, 0
      %s123 = sadd.s32 %s122, 1
      %s124 = scalar_select %p121, %s122, %s123
      %p127 = pneg %p121
      %p128 = scmp.eq.s32.totalorder %s16, 3
      %p129 = por %p127, %p128
      %p130 = scmp.ne.s32.totalorder %s122, %s125
      %p131 = scmp.eq.s32.totalorder %s16, 0
      %p132 = por %p130, %p131
      %p133 = scmp.ne.s32.totalorder %s122, %s125
      %p134 = scmp.eq.s32.totalorder %s21, 3
      %p135 = por %p133, %p134
      %p136 = scmp.ne.s32.totalorder %s125, %s126
      %p137 = scmp.eq.s32.totalorder %s21, 0
      %p138 = por %p136, %p137
      %p139 = scmp.ne.s32.totalorder %s125, %s126
      %p140 = scmp.eq.s32.totalorder %s22, 3
      %p141 = por %p139, %p140
      %p143 = scmp.ne.s32.totalorder %s126, %s142
      %p144 = scmp.eq.s32.totalorder %s22, 0
      %p145 = por %p143, %p144
      %s147 = sadd.s32 %s146, 1
      %p150 = scmp.eq.s32.totalorder %s16, 3
      %p151 = scmp.ne.s32.totalorder %s146, %s148
      %p152 = scmp.eq.s32.totalorder %s16, 0
      %p153 = por %p151, %p152
      %p154 = scmp.ne.s32.totalorder %s146, %s148
      %p155 = scmp.eq.s32.totalorder %s21, 3
      %p156 = por %p154, %p155
      %p157 = scmp.ne.s32.totalorder %s148, %s149
      %p158 = scmp.eq.s32.totalorder %s21, 0
      %p159 = por %p157, %p158
      %p160 = scmp.ne.s32.totalorder %s148, %s149
      %p161 = scmp.eq.s32.totalorder %s22, 3
      %p162 = por %p160, %p161
      %p164 = scmp.ne.s32.totalorder %s149, %s163
      %p165 = scmp.eq.s32.totalorder %s22, 0
      %p166 = por %p164, %p165
      %s168 = sadd.s32 %s167, 1
      %p171 = scmp.eq.s32.totalorder %s16, 3
      %p172 = scmp.ne.s32.totalorder %s167, %s169
      %p173 = scmp.eq.s32.totalorder %s16, 0
      %p174 = por %p172, %p173
      %p175 = scmp.ne.s32.totalorder %s167, %s169
      %p176 = scmp.eq.s32.totalorder %s21, 3
      %p177 = por %p175, %p176
      %p178 = scmp.ne.s32.totalorder %s169, %s170
      %p179 = scmp.eq.s32.totalorder %s21, 0
      %p180 = por %p178, %p179
      %p181 = scmp.ne.s32.totalorder %s169, %s170
      %p182 = scmp.eq.s32.totalorder %s22, 3
      %p183 = por %p181, %p182
      %p185 = scmp.ne.s32.totalorder %s170, %s184
      %p186 = scmp.eq.s32.totalorder %s22, 0
      %p187 = por %p185, %p186
      %s189 = sadd.s32 %s188, 1
      %p192 = scmp.eq.s32.totalorder %s16, 3
      %p193 = scmp.ne.s32.totalorder %s188, %s190
      %p194 = scmp.eq.s32.totalorder %s16, 0
      %p195 = por %p193, %p194
      %p196 = scmp.ne.s32.totalorder %s188, %s190
      %p197 = scmp.eq.s32.totalorder %s21, 3
      %p198 = por %p196, %p197
      %p199 = scmp.ne.s32.totalorder %s190, %s191
      %p200 = scmp.eq.s32.totalorder %s21, 0
      %p201 = por %p199, %p200
      %p202 = scmp.ne.s32.totalorder %s190, %s191
      %p203 = scmp.eq.s32.totalorder %s22, 3
      %p204 = por %p202, %p203
      %p206 = scmp.ne.s32.totalorder %s191, %s205
      %p207 = scmp.eq.s32.totalorder %s22, 0
      %p208 = por %p206, %p207
      %s209 = ssub.s32 %s23, %s35
      %s210 = ssub.s32 %s24, %s31
      %s211 = sor.u32 %s209, %s210
      %p212 = scmp.eq.s32.totalorder %s211, 0
      %s214 = sadd.s32 %s213, 1
      %s215 = scalar_select %p212, %s213, %s214
      %p218 = pneg %p212
      %p219 = scmp.eq.s32.totalorder %s16, 3
      %p220 = por %p218, %p219
      %p221 = scmp.ne.s32.totalorder %s213, %s216
      %p222 = scmp.eq.s32.totalorder %s16, 0
      %p223 = por %p221, %p222
      %p224 = scmp.ne.s32.totalorder %s213, %s216
      %p225 = scmp.eq.s32.totalorder %s21, 3
      %p226 = por %p224, %p225
      %p227 = scmp.ne.s32.totalorder %s216, %s217
      %p228 = scmp.eq.s32.totalorder %s21, 0
      %p229 = por %p227, %p228
      %p230 = scmp.ne.s32.totalorder %s216, %s217
      %p231 = scmp.eq.s32.totalorder %s22, 3
      %p232 = por %p230, %p231
      %p234 = scmp.ne.s32.totalorder %s217, %s233
      %p235 = scmp.eq.s32.totalorder %s22, 0
      %p236 = por %p234, %p235
      %p237 = scmp.le.s32.totalorder 1, %s16
      %p238 = scmp.lt.s32.totalorder %s16, 5
      %p239 = pnand %p237, %p238
      %p240 = pneg %p239
      // Predicated region
      $region9: #{tpu_custom_call.1} parent=5 // pred_check
        _
      $region10: #{tpu_custom_call.1} parent=5 // pred_check_branch
        %242 = sbr.rel (%p239) target = $region12
      $region11: #{tpu_custom_call.1} parent=5 // pred_region
        %s243 = ssub.s32 %s16, 1
        // Predicated region
        $region13: #{tpu_custom_call.1} parent=11 // pred_check
          %p244 = pneg %p159
        $region14: #{tpu_custom_call.1} parent=11 // pred_check_branch
          %246 = sbr.rel (%p244) target = $region16
        $region15: #{tpu_custom_call.1} parent=11 // pred_region
          _
        $region16: #{tpu_custom_call.1} parent=11 // pred_fallthru
          _
        // Predicated region
        $region17: #{tpu_custom_call.1} parent=11 // pred_check
          %p247 = pneg %p180
        $region18: #{tpu_custom_call.1} parent=11 // pred_check_branch
          %249 = sbr.rel (%p247) target = $region20
        $region19: #{tpu_custom_call.1} parent=11 // pred_region
          _
        $region20: #{tpu_custom_call.1} parent=11 // pred_fallthru
          _
        // Predicated region
        $region21: #{tpu_custom_call.1} parent=11 // pred_check
          %p250 = pneg %p201
        $region22: #{tpu_custom_call.1} parent=11 // pred_check_branch
          %252 = sbr.rel (%p250) target = $region24
        $region23: #{tpu_custom_call.1} parent=11 // pred_region
          _
        $region24: #{tpu_custom_call.1} parent=11 // pred_fallthru
          _
      $region12: #{tpu_custom_call.1} parent=5 // pred_fallthru
        _
      %p253 = scmp.lt.s32.totalorder %s16, 4
      // Predicated region
      $region25: #{tpu_custom_call.1} parent=5 // pred_check
        %p254 = pneg %p253
      $region26: #{tpu_custom_call.1} parent=5 // pred_check_branch
        %256 = sbr.rel (%p254) target = $region28
      $region27: #{tpu_custom_call.1} parent=5 // pred_region
        // Predicated region
        $region29: #{tpu_custom_call.1} parent=27 // pred_check
          %p257 = pneg %p50
        $region30: #{tpu_custom_call.1} parent=27 // pred_check_branch
          %259 = sbr.rel (%p257) target = $region32
        $region31: #{tpu_custom_call.1} parent=27 // pred_region
          %s260 = smul.u32 32, %s24
          %p261 = scmp.lt.s32.totalorder %s23, 1
          %s262 = scalar_select %p261, %s23, 1
          %p263 = scmp.lt.s32.totalorder %s260, 63
          %s264 = scalar_select %p263, %s260, 63
          %s265 = smul.addr %s262, 64
          %s266 = sadd.s32 %s264, %s265
          %s267 = smul.addr %s266, 4
          %s268 = scalar_lea.vmem %s0, %s267
          %s269 = smul.u32 32, %s24
        $region32: #{tpu_custom_call.1} parent=27 // pred_fallthru
          _
        // Predicated region
        $region33: #{tpu_custom_call.1} parent=27 // pred_check
          %p270 = pneg %p78
        $region34: #{tpu_custom_call.1} parent=27 // pred_check_branch
          %272 = sbr.rel (%p270) target = $region36
        $region35: #{tpu_custom_call.1} parent=27 // pred_region
          %s273 = smul.u32 32, %s24
          %p274 = scmp.lt.s32.totalorder %s23, 1
          %s275 = scalar_select %p274, %s23, 1
          %p276 = scmp.lt.s32.totalorder %s273, 63
          %s277 = scalar_select %p276, %s273, 63
          %s278 = smul.addr %s275, 64
          %s279 = sadd.s32 %s277, %s278
          %s280 = smul.addr %s279, 8
          %s281 = scalar_lea.vmem %s1, %s280
          %s282 = smul.u32 32, %s24
        $region36: #{tpu_custom_call.1} parent=27 // pred_fallthru
          _
        // Predicated region
        $region37: #{tpu_custom_call.1} parent=27 // pred_check
          %p283 = pneg %p106
        $region38: #{tpu_custom_call.1} parent=27 // pred_check_branch
          %285 = sbr.rel (%p283) target = $region40
        $region39: #{tpu_custom_call.1} parent=27 // pred_region
          %s286 = smul.u32 32, %s24
          %p287 = scmp.lt.s32.totalorder %s23, 1
          %s288 = scalar_select %p287, %s23, 1
          %p289 = scmp.lt.s32.totalorder %s286, 63
          %s290 = scalar_select %p289, %s286, 63
          %s291 = smul.addr %s288, 64
          %s292 = sadd.s32 %s290, %s291
          %s293 = smul.addr %s292, 8
          %s294 = scalar_lea.vmem %s2, %s293
          %s295 = smul.u32 32, %s24
        $region40: #{tpu_custom_call.1} parent=27 // pred_fallthru
          _
        // Predicated region
        $region41: #{tpu_custom_call.1} parent=27 // pred_check
          %p296 = pneg %p132
        $region42: #{tpu_custom_call.1} parent=27 // pred_check_branch
          %298 = sbr.rel (%p296) target = $region44
        $region43: #{tpu_custom_call.1} parent=27 // pred_region
          %p299 = scmp.lt.s32.totalorder %s23, 1
          %s300 = scalar_select %p299, %s23, 1
          %s301 = smul.addr %s300, 2
          %s302 = scalar_lea.vmem %s3, %s301
        $region44: #{tpu_custom_call.1} parent=27 // pred_fallthru
          _
      $region28: #{tpu_custom_call.1} parent=5 // pred_fallthru
        _
      %p303 = scmp.le.s32.totalorder 1, %s16
      %p304 = scmp.lt.s32.totalorder %s16, 5
      %p305 = pnand %p303, %p304
      %p306 = pneg %p305
      // Predicated region
      $region45: #{tpu_custom_call.1} parent=5 // pred_check
        _
      $region46: #{tpu_custom_call.1} parent=5 // pred_check_branch
        %308 = sbr.rel (%p305) target = $region48
      $region47: #{tpu_custom_call.1} parent=5 // pred_region
        %s309 = ssub.s32 %s16, 1
        %s310 = smul.u32 32, %s26
        %p311 = scmp.lt.s32.totalorder %s25, 1
        %s312 = scalar_select %p311, %s25, 1
        %p313 = scmp.lt.s32.totalorder %s310, 63
        %s314 = scalar_select %p313, %s310, 63
        %s315 = smul.addr %s312, 64
        %s316 = sadd.s32 %s314, %s315
        %s317 = smul.addr %s316, 4
        %s318 = scalar_lea.vmem %s0, %s317
        %p319 = pneg %p56
        %p320 = pneg %p53
        %s321 = smul.u32 32, %s26
        %p322 = scmp.lt.s32.totalorder %s25, 1
        %s323 = scalar_select %p322, %s25, 1
        %p324 = scmp.lt.s32.totalorder %s321, 63
        %s325 = scalar_select %p324, %s321, 63
        %s326 = smul.addr %s323, 64
        %s327 = sadd.s32 %s325, %s326
        %s328 = smul.addr %s327, 8
        %s329 = scalar_lea.vmem %s1, %s328
        %p330 = pneg %p84
        %p331 = pneg %p81
        %s332 = smul.u32 32, %s26
        %p333 = scmp.lt.s32.totalorder %s25, 1
        %s334 = scalar_select %p333, %s25, 1
        %p335 = scmp.lt.s32.totalorder %s332, 63
        %s336 = scalar_select %p335, %s332, 63
        %s337 = smul.addr %s334, 64
        %s338 = sadd.s32 %s336, %s337
        %s339 = smul.addr %s338, 8
        %s340 = scalar_lea.vmem %s2, %s339
        %p341 = pneg %p112
        %p342 = pneg %p109
        %p343 = scmp.lt.s32.totalorder %s25, 1
        %s344 = scalar_select %p343, %s25, 1
        %s345 = smul.addr %s344, 2
        %s346 = scalar_lea.vmem %s3, %s345
        %p347 = pneg %p138
        %p348 = pneg %p135
        %p349 = pneg %p159
        %p350 = pneg %p156
        %p351 = pneg %p180
        %p352 = pneg %p177
        %p353 = pneg %p201
        %p354 = pneg %p198
        %p355 = pneg %p229
        %p356 = pneg %p226
        %s357 = sand.u32 %s216, 1
        %s358 = scalar_lea.sflag [#allocation3], %s357
        %s359 = sand.u32 %s216, 1
        %s360 = smul.addr %s359, 512
        %s361 = scalar_lea.vmem [#allocation2], %s360
        %s362 = smul.u32 32, %s26
        %p363 = scmp.lt.s32.totalorder %s25, 1
        %s364 = scalar_select %p363, %s25, 1
        %p365 = scmp.lt.s32.totalorder %s362, 63
        %s366 = scalar_select %p365, %s362, 63
        %s367 = smul.addr %s364, 64
        %s368 = sadd.s32 %s366, %s367
        %s369 = smul.addr %s368, 4
        %s370 = scalar_lea.vmem %s0, %s369
        %s371 = smul.u32 32, %s26
        %s372 = smul.u32 32, %s26
        %p373 = scmp.lt.s32.totalorder %s25, 1
        %s374 = scalar_select %p373, %s25, 1
        %p375 = scmp.lt.s32.totalorder %s372, 63
        %s376 = scalar_select %p375, %s372, 63
        %s377 = smul.addr %s374, 64
        %s378 = sadd.s32 %s376, %s377
        %s379 = smul.addr %s378, 8
        %s380 = scalar_lea.vmem %s1, %s379
        %s381 = smul.u32 32, %s26
        %s382 = smul.u32 32, %s26
        %p383 = scmp.lt.s32.totalorder %s25, 1
        %s384 = scalar_select %p383, %s25, 1
        %p385 = scmp.lt.s32.totalorder %s382, 63
        %s386 = scalar_select %p385, %s382, 63
        %s387 = smul.addr %s384, 64
        %s388 = sadd.s32 %s386, %s387
        %s389 = smul.addr %s388, 8
        %s390 = scalar_lea.vmem %s2, %s389
        %s391 = smul.u32 32, %s26
        %p392 = scmp.lt.s32.totalorder %s25, 1
        %s393 = scalar_select %p392, %s25, 1
        %s394 = smul.addr %s393, 2
        %s395 = scalar_lea.vmem %s3, %s394
        %s396 = smul.u32 32, %s26
        %v398 = vld [vmem:[%s370] sm:$0xf]
        %v399 = vld [vmem:[%s370 + $0x4] sm:$0xf]
        %v400 = vld [vmem:[%s370 + $0x8] sm:$0xf]
        %v401 = vld [vmem:[%s370 + $0xc] sm:$0xf]
        %v402 = vld [vmem:[%s370 + $0x10] sm:$0xf]
        %v403 = vld [vmem:[%s370 + $0x14] sm:$0xf]
        %v404 = vld [vmem:[%s370 + $0x18] sm:$0xf]
        %v405 = vld [vmem:[%s370 + $0x1c] sm:$0xf]
        %v406 = vld [vmem:[%s370 + $0x20] sm:$0xf]
        %v407 = vld [vmem:[%s370 + $0x24] sm:$0xf]
        %v408 = vld [vmem:[%s370 + $0x28] sm:$0xf]
        %v409 = vld [vmem:[%s370 + $0x2c] sm:$0xf]
        %v410 = vld [vmem:[%s370 + $0x30] sm:$0xf]
        %v411 = vld [vmem:[%s370 + $0x34] sm:$0xf]
        %v412 = vld [vmem:[%s370 + $0x38] sm:$0xf]
        %v413 = vld [vmem:[%s370 + $0x3c] sm:$0xf]
        %v414 = vld [vmem:[%s370 + $0x40] sm:$0xf]
        %v415 = vld [vmem:[%s370 + $0x44] sm:$0xf]
        %v416 = vld [vmem:[%s370 + $0x48] sm:$0xf]
        %v417 = vld [vmem:[%s370 + $0x4c] sm:$0xf]
        %v418 = vld [vmem:[%s370 + $0x50] sm:$0xf]
        %v419 = vld [vmem:[%s370 + $0x54] sm:$0xf]
        %v420 = vld [vmem:[%s370 + $0x58] sm:$0xf]
        %v421 = vld [vmem:[%s370 + $0x5c] sm:$0xf]
        %v422 = vld [vmem:[%s370 + $0x60] sm:$0xf]
        %v423 = vld [vmem:[%s370 + $0x64] sm:$0xf]
        %v424 = vld [vmem:[%s370 + $0x68] sm:$0xf]
        %v425 = vld [vmem:[%s370 + $0x6c] sm:$0xf]
        %v426 = vld [vmem:[%s370 + $0x70] sm:$0xf]
        %v427 = vld [vmem:[%s370 + $0x74] sm:$0xf]
        %v428 = vld [vmem:[%s370 + $0x78] sm:$0xf]
        %v429 = vld [vmem:[%s370 + $0x7c] sm:$0xf]
        %v430 = vld [vmem:[%s380] sm:$0xff]
        %v431 = vld [vmem:[%s380 + $0x8] sm:$0xff]
        %v432 = vld [vmem:[%s380 + $0x10] sm:$0xff]
        %v433 = vld [vmem:[%s380 + $0x18] sm:$0xff]
        %v434 = vld [vmem:[%s380 + $0x20] sm:$0xff]
        %v435 = vld [vmem:[%s380 + $0x28] sm:$0xff]
        %v436 = vld [vmem:[%s380 + $0x30] sm:$0xff]
        %v437 = vld [vmem:[%s380 + $0x38] sm:$0xff]
        %v438 = vld [vmem:[%s380 + $0x40] sm:$0xff]
        %v439 = vld [vmem:[%s380 + $0x48] sm:$0xff]
        %v440 = vld [vmem:[%s380 + $0x50] sm:$0xff]
        %v441 = vld [vmem:[%s380 + $0x58] sm:$0xff]
        %v442 = vld [vmem:[%s380 + $0x60] sm:$0xff]
        %v443 = vld [vmem:[%s380 + $0x68] sm:$0xff]
        %v444 = vld [vmem:[%s380 + $0x70] sm:$0xff]
        %v445 = vld [vmem:[%s380 + $0x78] sm:$0xff]
        %v446 = vld [vmem:[%s380 + $0x80] sm:$0xff]
        %v447 = vld [vmem:[%s380 + $0x88] sm:$0xff]
        %v448 = vld [vmem:[%s380 + $0x90] sm:$0xff]
        %v449 = vld [vmem:[%s380 + $0x98] sm:$0xff]
        %v450 = vld [vmem:[%s380 + $0xa0] sm:$0xff]
        %v451 = vld [vmem:[%s380 + $0xa8] sm:$0xff]
        %v452 = vld [vmem:[%s380 + $0xb0] sm:$0xff]
        %v453 = vld [vmem:[%s380 + $0xb8] sm:$0xff]
        %v454 = vld [vmem:[%s380 + $0xc0] sm:$0xff]
        %v455 = vld [vmem:[%s380 + $0xc8] sm:$0xff]
        %v456 = vld [vmem:[%s380 + $0xd0] sm:$0xff]
        %v457 = vld [vmem:[%s380 + $0xd8] sm:$0xff]
        %v458 = vld [vmem:[%s380 + $0xe0] sm:$0xff]
        %v459 = vld [vmem:[%s380 + $0xe8] sm:$0xff]
        %v460 = vld [vmem:[%s380 + $0xf0] sm:$0xff]
        %v461 = vld [vmem:[%s380 + $0xf8] sm:$0xff]
        %v462 = vld [vmem:[%s390] sm:$0xff]
        %v463 = vld [vmem:[%s390 + $0x8] sm:$0xff]
        %v464 = vld [vmem:[%s390 + $0x10] sm:$0xff]
        %v465 = vld [vmem:[%s390 + $0x18] sm:$0xff]
        %v466 = vld [vmem:[%s390 + $0x20] sm:$0xff]
        %v467 = vld [vmem:[%s390 + $0x28] sm:$0xff]
        %v468 = vld [vmem:[%s390 + $0x30] sm:$0xff]
        %v469 = vld [vmem:[%s390 + $0x38] sm:$0xff]
        %v470 = vld [vmem:[%s390 + $0x40] sm:$0xff]
        %v471 = vld [vmem:[%s390 + $0x48] sm:$0xff]
        %v472 = vld [vmem:[%s390 + $0x50] sm:$0xff]
        %v473 = vld [vmem:[%s390 + $0x58] sm:$0xff]
        %v474 = vld [vmem:[%s390 + $0x60] sm:$0xff]
        %v475 = vld [vmem:[%s390 + $0x68] sm:$0xff]
        %v476 = vld [vmem:[%s390 + $0x70] sm:$0xff]
        %v477 = vld [vmem:[%s390 + $0x78] sm:$0xff]
        %v478 = vld [vmem:[%s390 + $0x80] sm:$0xff]
        %v479 = vld [vmem:[%s390 + $0x88] sm:$0xff]
        %v480 = vld [vmem:[%s390 + $0x90] sm:$0xff]
        %v481 = vld [vmem:[%s390 + $0x98] sm:$0xff]
        %v482 = vld [vmem:[%s390 + $0xa0] sm:$0xff]
        %v483 = vld [vmem:[%s390 + $0xa8] sm:$0xff]
        %v484 = vld [vmem:[%s390 + $0xb0] sm:$0xff]
        %v485 = vld [vmem:[%s390 + $0xb8] sm:$0xff]
        %v486 = vld [vmem:[%s390 + $0xc0] sm:$0xff]
        %v487 = vld [vmem:[%s390 + $0xc8] sm:$0xff]
        %v488 = vld [vmem:[%s390 + $0xd0] sm:$0xff]
        %v489 = vld [vmem:[%s390 + $0xd8] sm:$0xff]
        %v490 = vld [vmem:[%s390 + $0xe0] sm:$0xff]
        %v491 = vld [vmem:[%s390 + $0xe8] sm:$0xff]
        %v492 = vld [vmem:[%s390 + $0xf0] sm:$0xff]
        %v493 = vld [vmem:[%s390 + $0xf8] sm:$0xff]
        %v494 = vld [vmem:[%s4] sm:$0xff]
        %v495 = vld [vmem:[%s4 + $0x8] sm:$0xff]
        %v496 = vld [vmem:[%s4 + $0x10] sm:$0xff]
        %v497 = vld [vmem:[%s4 + $0x18] sm:$0xff]
        %v498 = vld [vmem:[%s4 + $0x20] sm:$0xff]
        %v499 = vld [vmem:[%s4 + $0x28] sm:$0xff]
        %v500 = vld [vmem:[%s4 + $0x30] sm:$0xff]
        %v501 = vld [vmem:[%s4 + $0x38] sm:$0xff]
        %v502 = vld [vmem:[%s4 + $0x40] sm:$0xff]
        %v503 = vld [vmem:[%s4 + $0x48] sm:$0xff]
        %v504 = vld [vmem:[%s4 + $0x50] sm:$0xff]
        %v505 = vld [vmem:[%s4 + $0x58] sm:$0xff]
        %v506 = vld [vmem:[%s4 + $0x60] sm:$0xff]
        %v507 = vld [vmem:[%s4 + $0x68] sm:$0xff]
        %v508 = vld [vmem:[%s4 + $0x70] sm:$0xff]
        %v509 = vld [vmem:[%s4 + $0x78] sm:$0xff]
        %v510 = vld [vmem:[%s6] sm:$0x3]
        %v512 = vlaneseq
        %v513 = vshrl.u32 %v512, 7
        %v514 = vsub.s32 0, %v513
        %v515 = vrot.slane %v510, %v514
        %v516 = vlaneseq
        %v517 = vshrl.u32 %v516, 7
        %v518 = vsub.s32 1, %v517
        %v519 = vrot.slane %v510, %v518
        %v554 = vunpack.c.l.b16 %v398
        %v555 = vunpack.c.l.b16 %v399
        %v556 = vunpack.c.l.b16 %v400
        %v557 = vunpack.c.l.b16 %v401
        %v558 = vunpack.c.l.b16 %v402
        %v559 = vunpack.c.l.b16 %v403
        %v560 = vunpack.c.l.b16 %v404
        %v561 = vunpack.c.l.b16 %v405
        %v562 = vunpack.c.l.b16 %v406
        %v563 = vunpack.c.l.b16 %v407
        %v564 = vunpack.c.l.b16 %v408
        %v565 = vunpack.c.l.b16 %v409
        %v566 = vunpack.c.l.b16 %v410
        %v567 = vunpack.c.l.b16 %v411
        %v568 = vunpack.c.l.b16 %v412
        %v569 = vunpack.c.l.b16 %v413
        %v570 = vunpack.c.l.b16 %v414
        %v571 = vunpack.c.l.b16 %v415
        %v572 = vunpack.c.l.b16 %v416
        %v573 = vunpack.c.l.b16 %v417
        %v574 = vunpack.c.l.b16 %v418
        %v575 = vunpack.c.l.b16 %v419
        %v576 = vunpack.c.l.b16 %v420
        %v577 = vunpack.c.l.b16 %v421
        %v578 = vunpack.c.l.b16 %v422
        %v579 = vunpack.c.l.b16 %v423
        %v580 = vunpack.c.l.b16 %v424
        %v581 = vunpack.c.l.b16 %v425
        %v582 = vunpack.c.l.b16 %v426
        %v583 = vunpack.c.l.b16 %v427
        %v584 = vunpack.c.l.b16 %v428
        %v585 = vunpack.c.l.b16 %v429
        %v586 = vpack.c.b16 %v555, %v554
        %v587 = vpack.c.b16 %v557, %v556
        %v588 = vpack.c.b16 %v559, %v558
        %v589 = vpack.c.b16 %v561, %v560
        %v590 = vpack.c.b16 %v563, %v562
        %v591 = vpack.c.b16 %v565, %v564
        %v592 = vpack.c.b16 %v567, %v566
        %v593 = vpack.c.b16 %v569, %v568
        %v594 = vpack.c.b16 %v571, %v570
        %v595 = vpack.c.b16 %v573, %v572
        %v596 = vpack.c.b16 %v575, %v574
        %v597 = vpack.c.b16 %v577, %v576
        %v598 = vpack.c.b16 %v579, %v578
        %v599 = vpack.c.b16 %v581, %v580
        %v600 = vpack.c.b16 %v583, %v582
        %v601 = vpack.c.b16 %v585, %v584
        %v634 = vunpack.c.l.b16 %v494
        %v635 = vunpack.c.h.b16 %v494
        %v636 = vunpack.c.l.b16 %v495
        %v637 = vunpack.c.h.b16 %v495
        %v638 = vunpack.c.l.b16 %v496
        %v639 = vunpack.c.h.b16 %v496
        %v640 = vunpack.c.l.b16 %v497
        %v641 = vunpack.c.h.b16 %v497
        %v642 = vunpack.c.l.b16 %v498
        %v643 = vunpack.c.h.b16 %v498
        %v644 = vunpack.c.l.b16 %v499
        %v645 = vunpack.c.h.b16 %v499
        %v646 = vunpack.c.l.b16 %v500
        %v647 = vunpack.c.h.b16 %v500
        %v648 = vunpack.c.l.b16 %v501
        %v649 = vunpack.c.h.b16 %v501
        %v650 = vunpack.c.l.b16 %v502
        %v651 = vunpack.c.h.b16 %v502
        %v652 = vunpack.c.l.b16 %v503
        %v653 = vunpack.c.h.b16 %v503
        %v654 = vunpack.c.l.b16 %v504
        %v655 = vunpack.c.h.b16 %v504
        %v656 = vunpack.c.l.b16 %v505
        %v657 = vunpack.c.h.b16 %v505
        %v658 = vunpack.c.l.b16 %v506
        %v659 = vunpack.c.h.b16 %v506
        %v660 = vunpack.c.l.b16 %v507
        %v661 = vunpack.c.h.b16 %v507
        %v662 = vunpack.c.l.b16 %v508
        %v663 = vunpack.c.h.b16 %v508
        %v664 = vunpack.c.l.b16 %v509
        %v665 = vunpack.c.h.b16 %v509
        %v666 = vpack.c.b16 %v636, %v634
        %v667 = vpack.c.b16 %v637, %v635
        %v668 = vpack.c.b16 %v640, %v638
        %v669 = vpack.c.b16 %v641, %v639
        %v670 = vpack.c.b16 %v644, %v642
        %v671 = vpack.c.b16 %v645, %v643
        %v672 = vpack.c.b16 %v648, %v646
        %v673 = vpack.c.b16 %v649, %v647
        %v674 = vpack.c.b16 %v652, %v650
        %v675 = vpack.c.b16 %v653, %v651
        %v676 = vpack.c.b16 %v656, %v654
        %v677 = vpack.c.b16 %v657, %v655
        %v678 = vpack.c.b16 %v660, %v658
        %v679 = vpack.c.b16 %v661, %v659
        %v680 = vpack.c.b16 %v664, %v662
        %v681 = vpack.c.b16 %v665, %v663
        %698 = vmatprep.subr.bf16.mxu0 %v681
        %699 = vmatpush1.bf16.msra.mxu0 %v680
        %700 = vmatprep.subr.bf16.mxu0 %v679
        %701 = vmatpush1.bf16.msra.mxu0 %v678
        %702 = vmatprep.subr.bf16.mxu0 %v677
        %703 = vmatpush1.bf16.msra.mxu0 %v676
        %704 = vmatprep.subr.bf16.mxu0 %v675
        %705 = vmatpush1.bf16.msra.mxu0 %v674
        %706 = vmatprep.subr.bf16.mxu0 %v673
        %707 = vmatpush1.bf16.msra.mxu0 %v672
        %708 = vmatprep.subr.bf16.mxu0 %v671
        %709 = vmatpush1.bf16.msra.mxu0 %v670
        %710 = vmatprep.subr.bf16.mxu0 %v669
        %711 = vmatpush1.bf16.msra.mxu0 %v668
        %712 = vmatprep.subr.bf16.mxu0 %v667
        %713 = vmatpush1.bf16.msra.mxu0 %v666
        %714 = vmatprep.subr.bf16.mxu0 0
        %715 = vmatpush2.bf16.msra.mxu0 0
        %716 = vmatprep.subr.bf16.mxu0 0
        %717 = vmatpush2.bf16.msra.mxu0 0
        %718 = vmatprep.subr.bf16.mxu0 0
        %719 = vmatpush2.bf16.msra.mxu0 0
        %720 = vmatprep.subr.bf16.mxu0 0
        %721 = vmatpush2.bf16.msra.mxu0 0
        %722 = vmatprep.subr.bf16.mxu0 0
        %723 = vmatpush2.bf16.msra.mxu0 0
        %724 = vmatprep.subr.bf16.mxu0 0
        %725 = vmatpush2.bf16.msra.mxu0 0
        %726 = vmatprep.subr.bf16.mxu0 0
        %727 = vmatpush2.bf16.msra.mxu0 0
        %728 = vmatprep.subr.bf16.mxu0 0
        %729 = vmatpush2.bf16.msra.mxu0 0
        %730 = vmatprep.mubr.bf16.mxu0 0
        %731 = vmatmul.mubr.bf16.gmra.mxu0 %v586
        %v732 = vpop.f32.mrf.mxu0
        %v733 = vadd.f32 %v515, %v732
        %v734 = vpop.f32.mrf.mxu0
        %v735 = vadd.f32 %v519, %v734
        %v736 = vpop.f32.mrf.mxu0
        %v737 = vadd.f32 %v515, %v736
        %v738 = vpop.f32.mrf.mxu0
        %v739 = vadd.f32 %v519, %v738
        %740 = vmatprep.mubr.bf16.mxu0 0
        %741 = vmatmul.mubr.bf16.gmra.mxu0 %v587
        %v742 = vpop.f32.mrf.mxu0
        %v743 = vadd.f32 %v515, %v742
        %v744 = vpop.f32.mrf.mxu0
        %v745 = vadd.f32 %v519, %v744
        %v746 = vpop.f32.mrf.mxu0
        %v747 = vadd.f32 %v515, %v746
        %v748 = vpop.f32.mrf.mxu0
        %v749 = vadd.f32 %v519, %v748
        %750 = vmatprep.mubr.bf16.mxu0 0
        %751 = vmatmul.mubr.bf16.gmra.mxu0 %v588
        %v752 = vpop.f32.mrf.mxu0
        %v753 = vadd.f32 %v515, %v752
        %v754 = vpop.f32.mrf.mxu0
        %v755 = vadd.f32 %v519, %v754
        %v756 = vpop.f32.mrf.mxu0
        %v757 = vadd.f32 %v515, %v756
        %v758 = vpop.f32.mrf.mxu0
        %v759 = vadd.f32 %v519, %v758
        %760 = vmatprep.mubr.bf16.mxu0 0
        %761 = vmatmul.mubr.bf16.gmra.mxu0 %v589
        %v762 = vpop.f32.mrf.mxu0
        %v763 = vadd.f32 %v515, %v762
        %v764 = vpop.f32.mrf.mxu0
        %v765 = vadd.f32 %v519, %v764
        %v766 = vpop.f32.mrf.mxu0
        %v767 = vadd.f32 %v515, %v766
        %v768 = vpop.f32.mrf.mxu0
        %v769 = vadd.f32 %v519, %v768
        %770 = vmatprep.mubr.bf16.mxu0 0
        %771 = vmatmul.mubr.bf16.gmra.mxu0 %v590
        %v772 = vpop.f32.mrf.mxu0
        %v773 = vadd.f32 %v515, %v772
        %v774 = vpop.f32.mrf.mxu0
        %v775 = vadd.f32 %v519, %v774
        %v776 = vpop.f32.mrf.mxu0
        %v777 = vadd.f32 %v515, %v776
        %v778 = vpop.f32.mrf.mxu0
        %v779 = vadd.f32 %v519, %v778
        %780 = vmatprep.mubr.bf16.mxu0 0
        %781 = vmatmul.mubr.bf16.gmra.mxu0 %v591
        %v782 = vpop.f32.mrf.mxu0
        %v783 = vadd.f32 %v515, %v782
        %v784 = vpop.f32.mrf.mxu0
        %v785 = vadd.f32 %v519, %v784
        %v786 = vpop.f32.mrf.mxu0
        %v787 = vadd.f32 %v515, %v786
        %v788 = vpop.f32.mrf.mxu0
        %v789 = vadd.f32 %v519, %v788
        %790 = vmatprep.mubr.bf16.mxu0 0
        %791 = vmatmul.mubr.bf16.gmra.mxu0 %v592
        %v792 = vpop.f32.mrf.mxu0
        %v793 = vadd.f32 %v515, %v792
        %v794 = vpop.f32.mrf.mxu0
        %v795 = vadd.f32 %v519, %v794
        %v796 = vpop.f32.mrf.mxu0
        %v797 = vadd.f32 %v515, %v796
        %v798 = vpop.f32.mrf.mxu0
        %v799 = vadd.f32 %v519, %v798
        %800 = vmatprep.mubr.bf16.mxu0 0
        %801 = vmatmul.mubr.bf16.gmra.mxu0 %v593
        %v802 = vpop.f32.mrf.mxu0
        %v803 = vadd.f32 %v515, %v802
        %v804 = vpop.f32.mrf.mxu0
        %v805 = vadd.f32 %v519, %v804
        %v806 = vpop.f32.mrf.mxu0
        %v807 = vadd.f32 %v515, %v806
        %v808 = vpop.f32.mrf.mxu0
        %v809 = vadd.f32 %v519, %v808
        %810 = vmatprep.mubr.bf16.mxu0 0
        %811 = vmatmul.mubr.bf16.gmra.mxu0 %v594
        %v812 = vpop.f32.mrf.mxu0
        %v813 = vadd.f32 %v515, %v812
        %v814 = vpop.f32.mrf.mxu0
        %v815 = vadd.f32 %v519, %v814
        %v816 = vpop.f32.mrf.mxu0
        %v817 = vadd.f32 %v515, %v816
        %v818 = vpop.f32.mrf.mxu0
        %v819 = vadd.f32 %v519, %v818
        %820 = vmatprep.mubr.bf16.mxu0 0
        %821 = vmatmul.mubr.bf16.gmra.mxu0 %v595
        %v822 = vpop.f32.mrf.mxu0
        %v823 = vadd.f32 %v515, %v822
        %v824 = vpop.f32.mrf.mxu0
        %v825 = vadd.f32 %v519, %v824
        %v826 = vpop.f32.mrf.mxu0
        %v827 = vadd.f32 %v515, %v826
        %v828 = vpop.f32.mrf.mxu0
        %v829 = vadd.f32 %v519, %v828
        %830 = vmatprep.mubr.bf16.mxu0 0
        %831 = vmatmul.mubr.bf16.gmra.mxu0 %v596
        %v832 = vpop.f32.mrf.mxu0
        %v833 = vadd.f32 %v515, %v832
        %v834 = vpop.f32.mrf.mxu0
        %v835 = vadd.f32 %v519, %v834
        %v836 = vpop.f32.mrf.mxu0
        %v837 = vadd.f32 %v515, %v836
        %v838 = vpop.f32.mrf.mxu0
        %v839 = vadd.f32 %v519, %v838
        %840 = vmatprep.mubr.bf16.mxu0 0
        %841 = vmatmul.mubr.bf16.gmra.mxu0 %v597
        %v842 = vpop.f32.mrf.mxu0
        %v843 = vadd.f32 %v515, %v842
        %v844 = vpop.f32.mrf.mxu0
        %v845 = vadd.f32 %v519, %v844
        %v846 = vpop.f32.mrf.mxu0
        %v847 = vadd.f32 %v515, %v846
        %v848 = vpop.f32.mrf.mxu0
        %v849 = vadd.f32 %v519, %v848
        %850 = vmatprep.mubr.bf16.mxu0 0
        %851 = vmatmul.mubr.bf16.gmra.mxu0 %v598
        %v852 = vpop.f32.mrf.mxu0
        %v853 = vadd.f32 %v515, %v852
        %v854 = vpop.f32.mrf.mxu0
        %v855 = vadd.f32 %v519, %v854
        %v856 = vpop.f32.mrf.mxu0
        %v857 = vadd.f32 %v515, %v856
        %v858 = vpop.f32.mrf.mxu0
        %v859 = vadd.f32 %v519, %v858
        %860 = vmatprep.mubr.bf16.mxu0 0
        %861 = vmatmul.mubr.bf16.gmra.mxu0 %v599
        %v862 = vpop.f32.mrf.mxu0
        %v863 = vadd.f32 %v515, %v862
        %v864 = vpop.f32.mrf.mxu0
        %v865 = vadd.f32 %v519, %v864
        %v866 = vpop.f32.mrf.mxu0
        %v867 = vadd.f32 %v515, %v866
        %v868 = vpop.f32.mrf.mxu0
        %v869 = vadd.f32 %v519, %v868
        %870 = vmatprep.mubr.bf16.mxu0 0
        %871 = vmatmul.mubr.bf16.gmra.mxu0 %v600
        %v872 = vpop.f32.mrf.mxu0
        %v873 = vadd.f32 %v515, %v872
        %v874 = vpop.f32.mrf.mxu0
        %v875 = vadd.f32 %v519, %v874
        %v876 = vpop.f32.mrf.mxu0
        %v877 = vadd.f32 %v515, %v876
        %v878 = vpop.f32.mrf.mxu0
        %v879 = vadd.f32 %v519, %v878
        %880 = vmatprep.mubr.bf16.mxu0 0
        %881 = vmatmul.mubr.bf16.gmra.mxu0 %v601
        %v882 = vpop.f32.mrf.mxu0
        %v883 = vadd.f32 %v515, %v882
        %v884 = vpop.f32.mrf.mxu0
        %v885 = vadd.f32 %v519, %v884
        %v886 = vpop.f32.mrf.mxu0
        %v887 = vadd.f32 %v515, %v886
        %v888 = vpop.f32.mrf.mxu0
        %v889 = vadd.f32 %v519, %v888
        %890 = vdwg.mxu0
        %v891 = vmul.f32 %v430, 0.0014285714
        %v892 = vmul.f32 %v431, 0.0014285714
        %v893 = vmul.f32 %v432, 0.0014285714
        %v894 = vmul.f32 %v433, 0.0014285714
        %v895 = vmul.f32 %v434, 0.0014285714
        %v896 = vmul.f32 %v435, 0.0014285714
        %v897 = vmul.f32 %v436, 0.0014285714
        %v898 = vmul.f32 %v437, 0.0014285714
        %v899 = vmul.f32 %v438, 0.0014285714
        %v900 = vmul.f32 %v439, 0.0014285714
        %v901 = vmul.f32 %v440, 0.0014285714
        %v902 = vmul.f32 %v441, 0.0014285714
        %v903 = vmul.f32 %v442, 0.0014285714
        %v904 = vmul.f32 %v443, 0.0014285714
        %v905 = vmul.f32 %v444, 0.0014285714
        %v906 = vmul.f32 %v445, 0.0014285714
        %v907 = vmul.f32 %v446, 0.0014285714
        %v908 = vmul.f32 %v447, 0.0014285714
        %v909 = vmul.f32 %v448, 0.0014285714
        %v910 = vmul.f32 %v449, 0.0014285714
        %v911 = vmul.f32 %v450, 0.0014285714
        %v912 = vmul.f32 %v451, 0.0014285714
        %v913 = vmul.f32 %v452, 0.0014285714
        %v914 = vmul.f32 %v453, 0.0014285714
        %v915 = vmul.f32 %v454, 0.0014285714
        %v916 = vmul.f32 %v455, 0.0014285714
        %v917 = vmul.f32 %v456, 0.0014285714
        %v918 = vmul.f32 %v457, 0.0014285714
        %v919 = vmul.f32 %v458, 0.0014285714
        %v920 = vmul.f32 %v459, 0.0014285714
        %v921 = vmul.f32 %v460, 0.0014285714
        %v922 = vmul.f32 %v461, 0.0014285714
        %v923 = vadd.f32 %v891, 1.0
        %v924 = vadd.f32 %v892, 1.0
        %v925 = vadd.f32 %v893, 1.0
        %v926 = vadd.f32 %v894, 1.0
        %v927 = vadd.f32 %v895, 1.0
        %v928 = vadd.f32 %v896, 1.0
        %v929 = vadd.f32 %v897, 1.0
        %v930 = vadd.f32 %v898, 1.0
        %v931 = vadd.f32 %v899, 1.0
        %v932 = vadd.f32 %v900, 1.0
        %v933 = vadd.f32 %v901, 1.0
        %v934 = vadd.f32 %v902, 1.0
        %v935 = vadd.f32 %v903, 1.0
        %v936 = vadd.f32 %v904, 1.0
        %v937 = vadd.f32 %v905, 1.0
        %v938 = vadd.f32 %v906, 1.0
        %v939 = vadd.f32 %v907, 1.0
        %v940 = vadd.f32 %v908, 1.0
        %v941 = vadd.f32 %v909, 1.0
        %v942 = vadd.f32 %v910, 1.0
        %v943 = vadd.f32 %v911, 1.0
        %v944 = vadd.f32 %v912, 1.0
        %v945 = vadd.f32 %v913, 1.0
        %v946 = vadd.f32 %v914, 1.0
        %v947 = vadd.f32 %v915, 1.0
        %v948 = vadd.f32 %v916, 1.0
        %v949 = vadd.f32 %v917, 1.0
        %v950 = vadd.f32 %v918, 1.0
        %v951 = vadd.f32 %v919, 1.0
        %v952 = vadd.f32 %v920, 1.0
        %v953 = vadd.f32 %v921, 1.0
        %v954 = vadd.f32 %v922, 1.0
        %v955 = vlog2.pop %v923
        %v956 = vmul.f32 %v955, 0.6931472
        %v957 = vlog2.pop %v924
        %v958 = vmul.f32 %v957, 0.6931472
        %v959 = vlog2.pop %v925
        %v960 = vmul.f32 %v959, 0.6931472
        %v961 = vlog2.pop %v926
        %v962 = vmul.f32 %v961, 0.6931472
        %v963 = vlog2.pop %v927
        %v964 = vmul.f32 %v963, 0.6931472
        %v965 = vlog2.pop %v928
        %v966 = vmul.f32 %v965, 0.6931472
        %v967 = vlog2.pop %v929
        %v968 = vmul.f32 %v967, 0.6931472
        %v969 = vlog2.pop %v930
        %v970 = vmul.f32 %v969, 0.6931472
        %v971 = vlog2.pop %v931
        %v972 = vmul.f32 %v971, 0.6931472
        %v973 = vlog2.pop %v932
        %v974 = vmul.f32 %v973, 0.6931472
        %v975 = vlog2.pop %v933
        %v976 = vmul.f32 %v975, 0.6931472
        %v977 = vlog2.pop %v934
        %v978 = vmul.f32 %v977, 0.6931472
        %v979 = vlog2.pop %v935
        %v980 = vmul.f32 %v979, 0.6931472
        %v981 = vlog2.pop %v936
        %v982 = vmul.f32 %v981, 0.6931472
        %v983 = vlog2.pop %v937
        %v984 = vmul.f32 %v983, 0.6931472
        %v985 = vlog2.pop %v938
        %v986 = vmul.f32 %v985, 0.6931472
        %v987 = vlog2.pop %v939
        %v988 = vmul.f32 %v987, 0.6931472
        %v989 = vlog2.pop %v940
        %v990 = vmul.f32 %v989, 0.6931472
        %v991 = vlog2.pop %v941
        %v992 = vmul.f32 %v991, 0.6931472
        %v993 = vlog2.pop %v942
        %v994 = vmul.f32 %v993, 0.6931472
        %v995 = vlog2.pop %v943
        %v996 = vmul.f32 %v995, 0.6931472
        %v997 = vlog2.pop %v944
        %v998 = vmul.f32 %v997, 0.6931472
        %v999 = vlog2.pop %v945
        %v1000 = vmul.f32 %v999, 0.6931472
        %v1001 = vlog2.pop %v946
        %v1002 = vmul.f32 %v1001, 0.6931472
        %v1003 = vlog2.pop %v947
        %v1004 = vmul.f32 %v1003, 0.6931472
        %v1005 = vlog2.pop %v948
        %v1006 = vmul.f32 %v1005, 0.6931472
        %v1007 = vlog2.pop %v949
        %v1008 = vmul.f32 %v1007, 0.6931472
        %v1009 = vlog2.pop %v950
        %v1010 = vmul.f32 %v1009, 0.6931472
        %v1011 = vlog2.pop %v951
        %v1012 = vmul.f32 %v1011, 0.6931472
        %v1013 = vlog2.pop %v952
        %v1014 = vmul.f32 %v1013, 0.6931472
        %v1015 = vlog2.pop %v953
        %v1016 = vmul.f32 %v1015, 0.6931472
        %v1017 = vlog2.pop %v954
        %v1018 = vmul.f32 %v1017, 0.6931472
        %v1019 = vld [vmem:[%s5] ss:$2 sm:$0x3]
        %1021 = vset.pattern.permute.xlu0 0
        %1022 = vperm.xlu0 %1021, %v956
        %v1023 = vpop.permute.xlu0 %1022
        %1026 = vset.pattern.permute.xlu0 0
        %1027 = vperm.xlu0 %1026, %v958
        %v1028 = vpop.permute.xlu0 %1027
        %1031 = vset.pattern.permute.xlu0 0
        %1032 = vperm.xlu0 %1031, %v960
        %v1033 = vpop.permute.xlu0 %1032
        %1036 = vset.pattern.permute.xlu0 0
        %1037 = vperm.xlu0 %1036, %v962
        %v1038 = vpop.permute.xlu0 %1037
        %1041 = vset.pattern.permute.xlu0 0
        %1042 = vperm.xlu0 %1041, %v964
        %v1043 = vpop.permute.xlu0 %1042
        %1046 = vset.pattern.permute.xlu0 0
        %1047 = vperm.xlu0 %1046, %v966
        %v1048 = vpop.permute.xlu0 %1047
        %1051 = vset.pattern.permute.xlu0 0
        %1052 = vperm.xlu0 %1051, %v968
        %v1053 = vpop.permute.xlu0 %1052
        %1056 = vset.pattern.permute.xlu0 0
        %1057 = vperm.xlu0 %1056, %v970
        %v1058 = vpop.permute.xlu0 %1057
        %1061 = vset.pattern.permute.xlu0 0
        %1062 = vperm.xlu0 %1061, %v972
        %v1063 = vpop.permute.xlu0 %1062
        %1066 = vset.pattern.permute.xlu0 0
        %1067 = vperm.xlu0 %1066, %v974
        %v1068 = vpop.permute.xlu0 %1067
        %1071 = vset.pattern.permute.xlu0 0
        %1072 = vperm.xlu0 %1071, %v976
        %v1073 = vpop.permute.xlu0 %1072
        %1076 = vset.pattern.permute.xlu0 0
        %1077 = vperm.xlu0 %1076, %v978
        %v1078 = vpop.permute.xlu0 %1077
        %1081 = vset.pattern.permute.xlu0 0
        %1082 = vperm.xlu0 %1081, %v980
        %v1083 = vpop.permute.xlu0 %1082
        %1086 = vset.pattern.permute.xlu0 0
        %1087 = vperm.xlu0 %1086, %v982
        %v1088 = vpop.permute.xlu0 %1087
        %1091 = vset.pattern.permute.xlu0 0
        %1092 = vperm.xlu0 %1091, %v984
        %v1093 = vpop.permute.xlu0 %1092
        %1096 = vset.pattern.permute.xlu0 0
        %1097 = vperm.xlu0 %1096, %v986
        %v1098 = vpop.permute.xlu0 %1097
        %1101 = vset.pattern.permute.xlu0 0
        %1102 = vperm.xlu0 %1101, %v988
        %v1103 = vpop.permute.xlu0 %1102
        %1106 = vset.pattern.permute.xlu0 0
        %1107 = vperm.xlu0 %1106, %v990
        %v1108 = vpop.permute.xlu0 %1107
        %1111 = vset.pattern.permute.xlu0 0
        %1112 = vperm.xlu0 %1111, %v992
        %v1113 = vpop.permute.xlu0 %1112
        %1116 = vset.pattern.permute.xlu0 0
        %1117 = vperm.xlu0 %1116, %v994
        %v1118 = vpop.permute.xlu0 %1117
        %1121 = vset.pattern.permute.xlu0 0
        %1122 = vperm.xlu0 %1121, %v996
        %v1123 = vpop.permute.xlu0 %1122
        %1126 = vset.pattern.permute.xlu0 0
        %1127 = vperm.xlu0 %1126, %v998
        %v1128 = vpop.permute.xlu0 %1127
        %1131 = vset.pattern.permute.xlu0 0
        %1132 = vperm.xlu0 %1131, %v1000
        %v1133 = vpop.permute.xlu0 %1132
        %1136 = vset.pattern.permute.xlu0 0
        %1137 = vperm.xlu0 %1136, %v1002
        %v1138 = vpop.permute.xlu0 %1137
        %1141 = vset.pattern.permute.xlu0 0
        %1142 = vperm.xlu0 %1141, %v1004
        %v1143 = vpop.permute.xlu0 %1142
        %1146 = vset.pattern.permute.xlu0 0
        %1147 = vperm.xlu0 %1146, %v1006
        %v1148 = vpop.permute.xlu0 %1147
        %1151 = vset.pattern.permute.xlu0 0
        %1152 = vperm.xlu0 %1151, %v1008
        %v1153 = vpop.permute.xlu0 %1152
        %1156 = vset.pattern.permute.xlu0 0
        %1157 = vperm.xlu0 %1156, %v1010
        %v1158 = vpop.permute.xlu0 %1157
        %1161 = vset.pattern.permute.xlu0 0
        %1162 = vperm.xlu0 %1161, %v1012
        %v1163 = vpop.permute.xlu0 %1162
        %1166 = vset.pattern.permute.xlu0 0
        %1167 = vperm.xlu0 %1166, %v1014
        %v1168 = vpop.permute.xlu0 %1167
        %1171 = vset.pattern.permute.xlu0 0
        %1172 = vperm.xlu0 %1171, %v1016
        %v1173 = vpop.permute.xlu0 %1172
        %1176 = vset.pattern.permute.xlu0 0
        %1177 = vperm.xlu0 %1176, %v1018
        %v1178 = vpop.permute.xlu0 %1177
        %v1181 = vlaneseq
        %v1182 = vshrl.u32 %v1181, 7
        %v1183 = vsub.s32 0, %v1182
        %v1184 = vrot.slane %v1019, %v1183
        %v1185 = vlaneseq
        %v1186 = vshrl.u32 %v1185, 7
        %v1187 = vsub.s32 1, %v1186
        %v1188 = vrot.slane %v1019, %v1187
        %v1191 = vmul.f32 %v1023, %v1184
        %v1192 = vmul.f32 %v1023, %v1188
        %v1193 = vmul.f32 %v1028, %v1184
        %v1194 = vmul.f32 %v1028, %v1188
        %v1195 = vmul.f32 %v1033, %v1184
        %v1196 = vmul.f32 %v1033, %v1188
        %v1197 = vmul.f32 %v1038, %v1184
        %v1198 = vmul.f32 %v1038, %v1188
        %v1199 = vmul.f32 %v1043, %v1184
        %v1200 = vmul.f32 %v1043, %v1188
        %v1201 = vmul.f32 %v1048, %v1184
        %v1202 = vmul.f32 %v1048, %v1188
        %v1203 = vmul.f32 %v1053, %v1184
        %v1204 = vmul.f32 %v1053, %v1188
        %v1205 = vmul.f32 %v1058, %v1184
        %v1206 = vmul.f32 %v1058, %v1188
        %v1207 = vmul.f32 %v1063, %v1184
        %v1208 = vmul.f32 %v1063, %v1188
        %v1209 = vmul.f32 %v1068, %v1184
        %v1210 = vmul.f32 %v1068, %v1188
        %v1211 = vmul.f32 %v1073, %v1184
        %v1212 = vmul.f32 %v1073, %v1188
        %v1213 = vmul.f32 %v1078, %v1184
        %v1214 = vmul.f32 %v1078, %v1188
        %v1215 = vmul.f32 %v1083, %v1184
        %v1216 = vmul.f32 %v1083, %v1188
        %v1217 = vmul.f32 %v1088, %v1184
        %v1218 = vmul.f32 %v1088, %v1188
        %v1219 = vmul.f32 %v1093, %v1184
        %v1220 = vmul.f32 %v1093, %v1188
        %v1221 = vmul.f32 %v1098, %v1184
        %v1222 = vmul.f32 %v1098, %v1188
        %v1223 = vmul.f32 %v1103, %v1184
        %v1224 = vmul.f32 %v1103, %v1188
        %v1225 = vmul.f32 %v1108, %v1184
        %v1226 = vmul.f32 %v1108, %v1188
        %v1227 = vmul.f32 %v1113, %v1184
        %v1228 = vmul.f32 %v1113, %v1188
        %v1229 = vmul.f32 %v1118, %v1184
        %v1230 = vmul.f32 %v1118, %v1188
        %v1231 = vmul.f32 %v1123, %v1184
        %v1232 = vmul.f32 %v1123, %v1188
        %v1233 = vmul.f32 %v1128, %v1184
        %v1234 = vmul.f32 %v1128, %v1188
        %v1235 = vmul.f32 %v1133, %v1184
        %v1236 = vmul.f32 %v1133, %v1188
        %v1237 = vmul.f32 %v1138, %v1184
        %v1238 = vmul.f32 %v1138, %v1188
        %v1239 = vmul.f32 %v1143, %v1184
        %v1240 = vmul.f32 %v1143, %v1188
        %v1241 = vmul.f32 %v1148, %v1184
        %v1242 = vmul.f32 %v1148, %v1188
        %v1243 = vmul.f32 %v1153, %v1184
        %v1244 = vmul.f32 %v1153, %v1188
        %v1245 = vmul.f32 %v1158, %v1184
        %v1246 = vmul.f32 %v1158, %v1188
        %v1247 = vmul.f32 %v1163, %v1184
        %v1248 = vmul.f32 %v1163, %v1188
        %v1249 = vmul.f32 %v1168, %v1184
        %v1250 = vmul.f32 %v1168, %v1188
        %v1251 = vmul.f32 %v1173, %v1184
        %v1252 = vmul.f32 %v1173, %v1188
        %v1253 = vmul.f32 %v1178, %v1184
        %v1254 = vmul.f32 %v1178, %v1188
        %v1255 = vadd.f32 %v733, %v1191
        %v1256 = vadd.f32 %v735, %v1192
        %v1257 = vadd.f32 %v737, %v1193
        %v1258 = vadd.f32 %v739, %v1194
        %v1259 = vadd.f32 %v743, %v1195
        %v1260 = vadd.f32 %v745, %v1196
        %v1261 = vadd.f32 %v747, %v1197
        %v1262 = vadd.f32 %v749, %v1198
        %v1263 = vadd.f32 %v753, %v1199
        %v1264 = vadd.f32 %v755, %v1200
        %v1265 = vadd.f32 %v757, %v1201
        %v1266 = vadd.f32 %v759, %v1202
        %v1267 = vadd.f32 %v763, %v1203
        %v1268 = vadd.f32 %v765, %v1204
        %v1269 = vadd.f32 %v767, %v1205
        %v1270 = vadd.f32 %v769, %v1206
        %v1271 = vadd.f32 %v773, %v1207
        %v1272 = vadd.f32 %v775, %v1208
        %v1273 = vadd.f32 %v777, %v1209
        %v1274 = vadd.f32 %v779, %v1210
        %v1275 = vadd.f32 %v783, %v1211
        %v1276 = vadd.f32 %v785, %v1212
        %v1277 = vadd.f32 %v787, %v1213
        %v1278 = vadd.f32 %v789, %v1214
        %v1279 = vadd.f32 %v793, %v1215
        %v1280 = vadd.f32 %v795, %v1216
        %v1281 = vadd.f32 %v797, %v1217
        %v1282 = vadd.f32 %v799, %v1218
        %v1283 = vadd.f32 %v803, %v1219
        %v1284 = vadd.f32 %v805, %v1220
        %v1285 = vadd.f32 %v807, %v1221
        %v1286 = vadd.f32 %v809, %v1222
        %v1287 = vadd.f32 %v813, %v1223
        %v1288 = vadd.f32 %v815, %v1224
        %v1289 = vadd.f32 %v817, %v1225
        %v1290 = vadd.f32 %v819, %v1226
        %v1291 = vadd.f32 %v823, %v1227
        %v1292 = vadd.f32 %v825, %v1228
        %v1293 = vadd.f32 %v827, %v1229
        %v1294 = vadd.f32 %v829, %v1230
        %v1295 = vadd.f32 %v833, %v1231
        %v1296 = vadd.f32 %v835, %v1232
        %v1297 = vadd.f32 %v837, %v1233
        %v1298 = vadd.f32 %v839, %v1234
        %v1299 = vadd.f32 %v843, %v1235
        %v1300 = vadd.f32 %v845, %v1236
        %v1301 = vadd.f32 %v847, %v1237
        %v1302 = vadd.f32 %v849, %v1238
        %v1303 = vadd.f32 %v853, %v1239
        %v1304 = vadd.f32 %v855, %v1240
        %v1305 = vadd.f32 %v857, %v1241
        %v1306 = vadd.f32 %v859, %v1242
        %v1307 = vadd.f32 %v863, %v1243
        %v1308 = vadd.f32 %v865, %v1244
        %v1309 = vadd.f32 %v867, %v1245
        %v1310 = vadd.f32 %v869, %v1246
        %v1311 = vadd.f32 %v873, %v1247
        %v1312 = vadd.f32 %v875, %v1248
        %v1313 = vadd.f32 %v877, %v1249
        %v1314 = vadd.f32 %v879, %v1250
        %v1315 = vadd.f32 %v883, %v1251
        %v1316 = vadd.f32 %v885, %v1252
        %v1317 = vadd.f32 %v887, %v1253
        %v1318 = vadd.f32 %v889, %v1254
        %s1319 = scalar_lea.vmem %s5, 1
        %v1320 = vld [vmem:[%s1319] ss:$2 sm:$0x3]
        %1322 = vset.pattern.permute.xlu0 0
        %1323 = vperm.xlu0 %1322, %v462
        %v1324 = vpop.permute.xlu0 %1323
        %1327 = vset.pattern.permute.xlu0 0
        %1328 = vperm.xlu0 %1327, %v463
        %v1329 = vpop.permute.xlu0 %1328
        %1332 = vset.pattern.permute.xlu0 0
        %1333 = vperm.xlu0 %1332, %v464
        %v1334 = vpop.permute.xlu0 %1333
        %1337 = vset.pattern.permute.xlu0 0
        %1338 = vperm.xlu0 %1337, %v465
        %v1339 = vpop.permute.xlu0 %1338
        %1342 = vset.pattern.permute.xlu0 0
        %1343 = vperm.xlu0 %1342, %v466
        %v1344 = vpop.permute.xlu0 %1343
        %1347 = vset.pattern.permute.xlu0 0
        %1348 = vperm.xlu0 %1347, %v467
        %v1349 = vpop.permute.xlu0 %1348
        %1352 = vset.pattern.permute.xlu0 0
        %1353 = vperm.xlu0 %1352, %v468
        %v1354 = vpop.permute.xlu0 %1353
        %1357 = vset.pattern.permute.xlu0 0
        %1358 = vperm.xlu0 %1357, %v469
        %v1359 = vpop.permute.xlu0 %1358
        %1362 = vset.pattern.permute.xlu0 0
        %1363 = vperm.xlu0 %1362, %v470
        %v1364 = vpop.permute.xlu0 %1363
        %1367 = vset.pattern.permute.xlu0 0
        %1368 = vperm.xlu0 %1367, %v471
        %v1369 = vpop.permute.xlu0 %1368
        %1372 = vset.pattern.permute.xlu0 0
        %1373 = vperm.xlu0 %1372, %v472
        %v1374 = vpop.permute.xlu0 %1373
        %1377 = vset.pattern.permute.xlu0 0
        %1378 = vperm.xlu0 %1377, %v473
        %v1379 = vpop.permute.xlu0 %1378
        %1382 = vset.pattern.permute.xlu0 0
        %1383 = vperm.xlu0 %1382, %v474
        %v1384 = vpop.permute.xlu0 %1383
        %1387 = vset.pattern.permute.xlu0 0
        %1388 = vperm.xlu0 %1387, %v475
        %v1389 = vpop.permute.xlu0 %1388
        %1392 = vset.pattern.permute.xlu0 0
        %1393 = vperm.xlu0 %1392, %v476
        %v1394 = vpop.permute.xlu0 %1393
        %1397 = vset.pattern.permute.xlu0 0
        %1398 = vperm.xlu0 %1397, %v477
        %v1399 = vpop.permute.xlu0 %1398
        %1402 = vset.pattern.permute.xlu0 0
        %1403 = vperm.xlu0 %1402, %v478
        %v1404 = vpop.permute.xlu0 %1403
        %1407 = vset.pattern.permute.xlu0 0
        %1408 = vperm.xlu0 %1407, %v479
        %v1409 = vpop.permute.xlu0 %1408
        %1412 = vset.pattern.permute.xlu0 0
        %1413 = vperm.xlu0 %1412, %v480
        %v1414 = vpop.permute.xlu0 %1413
        %1417 = vset.pattern.permute.xlu0 0
        %1418 = vperm.xlu0 %1417, %v481
        %v1419 = vpop.permute.xlu0 %1418
        %1422 = vset.pattern.permute.xlu0 0
        %1423 = vperm.xlu0 %1422, %v482
        %v1424 = vpop.permute.xlu0 %1423
        %1427 = vset.pattern.permute.xlu0 0
        %1428 = vperm.xlu0 %1427, %v483
        %v1429 = vpop.permute.xlu0 %1428
        %1432 = vset.pattern.permute.xlu0 0
        %1433 = vperm.xlu0 %1432, %v484
        %v1434 = vpop.permute.xlu0 %1433
        %1437 = vset.pattern.permute.xlu0 0
        %1438 = vperm.xlu0 %1437, %v485
        %v1439 = vpop.permute.xlu0 %1438
        %1442 = vset.pattern.permute.xlu0 0
        %1443 = vperm.xlu0 %1442, %v486
        %v1444 = vpop.permute.xlu0 %1443
        %1447 = vset.pattern.permute.xlu0 0
        %1448 = vperm.xlu0 %1447, %v487
        %v1449 = vpop.permute.xlu0 %1448
        %1452 = vset.pattern.permute.xlu0 0
        %1453 = vperm.xlu0 %1452, %v488
        %v1454 = vpop.permute.xlu0 %1453
        %1457 = vset.pattern.permute.xlu0 0
        %1458 = vperm.xlu0 %1457, %v489
        %v1459 = vpop.permute.xlu0 %1458
        %1462 = vset.pattern.permute.xlu0 0
        %1463 = vperm.xlu0 %1462, %v490
        %v1464 = vpop.permute.xlu0 %1463
        %1467 = vset.pattern.permute.xlu0 0
        %1468 = vperm.xlu0 %1467, %v491
        %v1469 = vpop.permute.xlu0 %1468
        %1472 = vset.pattern.permute.xlu0 0
        %1473 = vperm.xlu0 %1472, %v492
        %v1474 = vpop.permute.xlu0 %1473
        %1477 = vset.pattern.permute.xlu0 0
        %1478 = vperm.xlu0 %1477, %v493
        %v1479 = vpop.permute.xlu0 %1478
        %v1482 = vlaneseq
        %v1483 = vshrl.u32 %v1482, 7
        %v1484 = vsub.s32 0, %v1483
        %v1485 = vrot.slane %v1320, %v1484
        %v1486 = vlaneseq
        %v1487 = vshrl.u32 %v1486, 7
        %v1488 = vsub.s32 1, %v1487
        %v1489 = vrot.slane %v1320, %v1488
        %v1492 = vmul.f32 %v1324, %v1485
        %v1493 = vmul.f32 %v1324, %v1489
        %v1494 = vmul.f32 %v1329, %v1485
        %v1495 = vmul.f32 %v1329, %v1489
        %v1496 = vmul.f32 %v1334, %v1485
        %v1497 = vmul.f32 %v1334, %v1489
        %v1498 = vmul.f32 %v1339, %v1485
        %v1499 = vmul.f32 %v1339, %v1489
        %v1500 = vmul.f32 %v1344, %v1485
        %v1501 = vmul.f32 %v1344, %v1489
        %v1502 = vmul.f32 %v1349, %v1485
        %v1503 = vmul.f32 %v1349, %v1489
        %v1504 = vmul.f32 %v1354, %v1485
        %v1505 = vmul.f32 %v1354, %v1489
        %v1506 = vmul.f32 %v1359, %v1485
        %v1507 = vmul.f32 %v1359, %v1489
        %v1508 = vmul.f32 %v1364, %v1485
        %v1509 = vmul.f32 %v1364, %v1489
        %v1510 = vmul.f32 %v1369, %v1485
        %v1511 = vmul.f32 %v1369, %v1489
        %v1512 = vmul.f32 %v1374, %v1485
        %v1513 = vmul.f32 %v1374, %v1489
        %v1514 = vmul.f32 %v1379, %v1485
        %v1515 = vmul.f32 %v1379, %v1489
        %v1516 = vmul.f32 %v1384, %v1485
        %v1517 = vmul.f32 %v1384, %v1489
        %v1518 = vmul.f32 %v1389, %v1485
        %v1519 = vmul.f32 %v1389, %v1489
        %v1520 = vmul.f32 %v1394, %v1485
        %v1521 = vmul.f32 %v1394, %v1489
        %v1522 = vmul.f32 %v1399, %v1485
        %v1523 = vmul.f32 %v1399, %v1489
        %v1524 = vmul.f32 %v1404, %v1485
        %v1525 = vmul.f32 %v1404, %v1489
        %v1526 = vmul.f32 %v1409, %v1485
        %v1527 = vmul.f32 %v1409, %v1489
        %v1528 = vmul.f32 %v1414, %v1485
        %v1529 = vmul.f32 %v1414, %v1489
        %v1530 = vmul.f32 %v1419, %v1485
        %v1531 = vmul.f32 %v1419, %v1489
        %v1532 = vmul.f32 %v1424, %v1485
        %v1533 = vmul.f32 %v1424, %v1489
        %v1534 = vmul.f32 %v1429, %v1485
        %v1535 = vmul.f32 %v1429, %v1489
        %v1536 = vmul.f32 %v1434, %v1485
        %v1537 = vmul.f32 %v1434, %v1489
        %v1538 = vmul.f32 %v1439, %v1485
        %v1539 = vmul.f32 %v1439, %v1489
        %v1540 = vmul.f32 %v1444, %v1485
        %v1541 = vmul.f32 %v1444, %v1489
        %v1542 = vmul.f32 %v1449, %v1485
        %v1543 = vmul.f32 %v1449, %v1489
        %v1544 = vmul.f32 %v1454, %v1485
        %v1545 = vmul.f32 %v1454, %v1489
        %v1546 = vmul.f32 %v1459, %v1485
        %v1547 = vmul.f32 %v1459, %v1489
        %v1548 = vmul.f32 %v1464, %v1485
        %v1549 = vmul.f32 %v1464, %v1489
        %v1550 = vmul.f32 %v1469, %v1485
        %v1551 = vmul.f32 %v1469, %v1489
        %v1552 = vmul.f32 %v1474, %v1485
        %v1553 = vmul.f32 %v1474, %v1489
        %v1554 = vmul.f32 %v1479, %v1485
        %v1555 = vmul.f32 %v1479, %v1489
        %v1556 = vadd.f32 %v1255, %v1492
        %v1557 = vadd.f32 %v1256, %v1493
        %v1558 = vadd.f32 %v1257, %v1494
        %v1559 = vadd.f32 %v1258, %v1495
        %v1560 = vadd.f32 %v1259, %v1496
        %v1561 = vadd.f32 %v1260, %v1497
        %v1562 = vadd.f32 %v1261, %v1498
        %v1563 = vadd.f32 %v1262, %v1499
        %v1564 = vadd.f32 %v1263, %v1500
        %v1565 = vadd.f32 %v1264, %v1501
        %v1566 = vadd.f32 %v1265, %v1502
        %v1567 = vadd.f32 %v1266, %v1503
        %v1568 = vadd.f32 %v1267, %v1504
        %v1569 = vadd.f32 %v1268, %v1505
        %v1570 = vadd.f32 %v1269, %v1506
        %v1571 = vadd.f32 %v1270, %v1507
        %v1572 = vadd.f32 %v1271, %v1508
        %v1573 = vadd.f32 %v1272, %v1509
        %v1574 = vadd.f32 %v1273, %v1510
        %v1575 = vadd.f32 %v1274, %v1511
        %v1576 = vadd.f32 %v1275, %v1512
        %v1577 = vadd.f32 %v1276, %v1513
        %v1578 = vadd.f32 %v1277, %v1514
        %v1579 = vadd.f32 %v1278, %v1515
        %v1580 = vadd.f32 %v1279, %v1516
        %v1581 = vadd.f32 %v1280, %v1517
        %v1582 = vadd.f32 %v1281, %v1518
        %v1583 = vadd.f32 %v1282, %v1519
        %v1584 = vadd.f32 %v1283, %v1520
        %v1585 = vadd.f32 %v1284, %v1521
        %v1586 = vadd.f32 %v1285, %v1522
        %v1587 = vadd.f32 %v1286, %v1523
        %v1588 = vadd.f32 %v1287, %v1524
        %v1589 = vadd.f32 %v1288, %v1525
        %v1590 = vadd.f32 %v1289, %v1526
        %v1591 = vadd.f32 %v1290, %v1527
        %v1592 = vadd.f32 %v1291, %v1528
        %v1593 = vadd.f32 %v1292, %v1529
        %v1594 = vadd.f32 %v1293, %v1530
        %v1595 = vadd.f32 %v1294, %v1531
        %v1596 = vadd.f32 %v1295, %v1532
        %v1597 = vadd.f32 %v1296, %v1533
        %v1598 = vadd.f32 %v1297, %v1534
        %v1599 = vadd.f32 %v1298, %v1535
        %v1600 = vadd.f32 %v1299, %v1536
        %v1601 = vadd.f32 %v1300, %v1537
        %v1602 = vadd.f32 %v1301, %v1538
        %v1603 = vadd.f32 %v1302, %v1539
        %v1604 = vadd.f32 %v1303, %v1540
        %v1605 = vadd.f32 %v1304, %v1541
        %v1606 = vadd.f32 %v1305, %v1542
        %v1607 = vadd.f32 %v1306, %v1543
        %v1608 = vadd.f32 %v1307, %v1544
        %v1609 = vadd.f32 %v1308, %v1545
        %v1610 = vadd.f32 %v1309, %v1546
        %v1611 = vadd.f32 %v1310, %v1547
        %v1612 = vadd.f32 %v1311, %v1548
        %v1613 = vadd.f32 %v1312, %v1549
        %v1614 = vadd.f32 %v1313, %v1550
        %v1615 = vadd.f32 %v1314, %v1551
        %v1616 = vadd.f32 %v1315, %v1552
        %v1617 = vadd.f32 %v1316, %v1553
        %v1618 = vadd.f32 %v1317, %v1554
        %v1619 = vadd.f32 %v1318, %v1555
        %v1620 = vld [vmem:[%s395] sm:$0x3]
        %v1622 = vlaneseq
        %v1623 = vshrl.u32 %v1622, 7
        %v1624 = vsub.s32 0, %v1623
        %v1625 = vrot.slane %v1620, %v1624
        %v1626 = vlaneseq
        %v1627 = vshrl.u32 %v1626, 7
        %v1628 = vsub.s32 1, %v1627
        %v1629 = vrot.slane %v1620, %v1628
        %v1632 = vadd.f32 %v1556, %v1625
        %v1633 = vadd.f32 %v1557, %v1629
        %v1634 = vadd.f32 %v1558, %v1625
        %v1635 = vadd.f32 %v1559, %v1629
        %v1636 = vadd.f32 %v1560, %v1625
        %v1637 = vadd.f32 %v1561, %v1629
        %v1638 = vadd.f32 %v1562, %v1625
        %v1639 = vadd.f32 %v1563, %v1629
        %v1640 = vadd.f32 %v1564, %v1625
        %v1641 = vadd.f32 %v1565, %v1629
        %v1642 = vadd.f32 %v1566, %v1625
        %v1643 = vadd.f32 %v1567, %v1629
        %v1644 = vadd.f32 %v1568, %v1625
        %v1645 = vadd.f32 %v1569, %v1629
        %v1646 = vadd.f32 %v1570, %v1625
        %v1647 = vadd.f32 %v1571, %v1629
        %v1648 = vadd.f32 %v1572, %v1625
        %v1649 = vadd.f32 %v1573, %v1629
        %v1650 = vadd.f32 %v1574, %v1625
        %v1651 = vadd.f32 %v1575, %v1629
        %v1652 = vadd.f32 %v1576, %v1625
        %v1653 = vadd.f32 %v1577, %v1629
        %v1654 = vadd.f32 %v1578, %v1625
        %v1655 = vadd.f32 %v1579, %v1629
        %v1656 = vadd.f32 %v1580, %v1625
        %v1657 = vadd.f32 %v1581, %v1629
        %v1658 = vadd.f32 %v1582, %v1625
        %v1659 = vadd.f32 %v1583, %v1629
        %v1660 = vadd.f32 %v1584, %v1625
        %v1661 = vadd.f32 %v1585, %v1629
        %v1662 = vadd.f32 %v1586, %v1625
        %v1663 = vadd.f32 %v1587, %v1629
        %v1664 = vadd.f32 %v1588, %v1625
        %v1665 = vadd.f32 %v1589, %v1629
        %v1666 = vadd.f32 %v1590, %v1625
        %v1667 = vadd.f32 %v1591, %v1629
        %v1668 = vadd.f32 %v1592, %v1625
        %v1669 = vadd.f32 %v1593, %v1629
        %v1670 = vadd.f32 %v1594, %v1625
        %v1671 = vadd.f32 %v1595, %v1629
        %v1672 = vadd.f32 %v1596, %v1625
        %v1673 = vadd.f32 %v1597, %v1629
        %v1674 = vadd.f32 %v1598, %v1625
        %v1675 = vadd.f32 %v1599, %v1629
        %v1676 = vadd.f32 %v1600, %v1625
        %v1677 = vadd.f32 %v1601, %v1629
        %v1678 = vadd.f32 %v1602, %v1625
        %v1679 = vadd.f32 %v1603, %v1629
        %v1680 = vadd.f32 %v1604, %v1625
        %v1681 = vadd.f32 %v1605, %v1629
        %v1682 = vadd.f32 %v1606, %v1625
        %v1683 = vadd.f32 %v1607, %v1629
        %v1684 = vadd.f32 %v1608, %v1625
        %v1685 = vadd.f32 %v1609, %v1629
        %v1686 = vadd.f32 %v1610, %v1625
        %v1687 = vadd.f32 %v1611, %v1629
        %v1688 = vadd.f32 %v1612, %v1625
        %v1689 = vadd.f32 %v1613, %v1629
        %v1690 = vadd.f32 %v1614, %v1625
        %v1691 = vadd.f32 %v1615, %v1629
        %v1692 = vadd.f32 %v1616, %v1625
        %v1693 = vadd.f32 %v1617, %v1629
        %v1694 = vadd.f32 %v1618, %v1625
        %v1695 = vadd.f32 %v1619, %v1629
        %1696 = vst [vmem:[%s361] sm:$0xff] %v1632
        %1697 = vst [vmem:[%s361 + $0x8] sm:$0xff] %v1633
        %1698 = vst [vmem:[%s361 + $0x10] sm:$0xff] %v1634
        %1699 = vst [vmem:[%s361 + $0x18] sm:$0xff] %v1635
        %1700 = vst [vmem:[%s361 + $0x20] sm:$0xff] %v1636
        %1701 = vst [vmem:[%s361 + $0x28] sm:$0xff] %v1637
        %1702 = vst [vmem:[%s361 + $0x30] sm:$0xff] %v1638
        %1703 = vst [vmem:[%s361 + $0x38] sm:$0xff] %v1639
        %1704 = vst [vmem:[%s361 + $0x40] sm:$0xff] %v1640
        %1705 = vst [vmem:[%s361 + $0x48] sm:$0xff] %v1641
        %1706 = vst [vmem:[%s361 + $0x50] sm:$0xff] %v1642
        %1707 = vst [vmem:[%s361 + $0x58] sm:$0xff] %v1643
        %1708 = vst [vmem:[%s361 + $0x60] sm:$0xff] %v1644
        %1709 = vst [vmem:[%s361 + $0x68] sm:$0xff] %v1645
        %1710 = vst [vmem:[%s361 + $0x70] sm:$0xff] %v1646
        %1711 = vst [vmem:[%s361 + $0x78] sm:$0xff] %v1647
        %1712 = vst [vmem:[%s361 + $0x80] sm:$0xff] %v1648
        %1713 = vst [vmem:[%s361 + $0x88] sm:$0xff] %v1649
        %1714 = vst [vmem:[%s361 + $0x90] sm:$0xff] %v1650
        %1715 = vst [vmem:[%s361 + $0x98] sm:$0xff] %v1651
        %1716 = vst [vmem:[%s361 + $0xa0] sm:$0xff] %v1652
        %1717 = vst [vmem:[%s361 + $0xa8] sm:$0xff] %v1653
        %1718 = vst [vmem:[%s361 + $0xb0] sm:$0xff] %v1654
        %1719 = vst [vmem:[%s361 + $0xb8] sm:$0xff] %v1655
        %1720 = vst [vmem:[%s361 + $0xc0] sm:$0xff] %v1656
        %1721 = vst [vmem:[%s361 + $0xc8] sm:$0xff] %v1657
        %1722 = vst [vmem:[%s361 + $0xd0] sm:$0xff] %v1658
        %1723 = vst [vmem:[%s361 + $0xd8] sm:$0xff] %v1659
        %1724 = vst [vmem:[%s361 + $0xe0] sm:$0xff] %v1660
        %1725 = vst [vmem:[%s361 + $0xe8] sm:$0xff] %v1661
        %1726 = vst [vmem:[%s361 + $0xf0] sm:$0xff] %v1662
        %1727 = vst [vmem:[%s361 + $0xf8] sm:$0xff] %v1663
        %1728 = vst [vmem:[%s361 + $0x100] sm:$0xff] %v1664
        %1729 = vst [vmem:[%s361 + $0x108] sm:$0xff] %v1665
        %1730 = vst [vmem:[%s361 + $0x110] sm:$0xff] %v1666
        %1731 = vst [vmem:[%s361 + $0x118] sm:$0xff] %v1667
        %1732 = vst [vmem:[%s361 + $0x120] sm:$0xff] %v1668
        %1733 = vst [vmem:[%s361 + $0x128] sm:$0xff] %v1669
        %1734 = vst [vmem:[%s361 + $0x130] sm:$0xff] %v1670
        %1735 = vst [vmem:[%s361 + $0x138] sm:$0xff] %v1671
        %1736 = vst [vmem:[%s361 + $0x140] sm:$0xff] %v1672
        %1737 = vst [vmem:[%s361 + $0x148] sm:$0xff] %v1673
        %1738 = vst [vmem:[%s361 + $0x150] sm:$0xff] %v1674
        %1739 = vst [vmem:[%s361 + $0x158] sm:$0xff] %v1675
        %1740 = vst [vmem:[%s361 + $0x160] sm:$0xff] %v1676
        %1741 = vst [vmem:[%s361 + $0x168] sm:$0xff] %v1677
        %1742 = vst [vmem:[%s361 + $0x170] sm:$0xff] %v1678
        %1743 = vst [vmem:[%s361 + $0x178] sm:$0xff] %v1679
        %1744 = vst [vmem:[%s361 + $0x180] sm:$0xff] %v1680
        %1745 = vst [vmem:[%s361 + $0x188] sm:$0xff] %v1681
        %1746 = vst [vmem:[%s361 + $0x190] sm:$0xff] %v1682
        %1747 = vst [vmem:[%s361 + $0x198] sm:$0xff] %v1683
        %1748 = vst [vmem:[%s361 + $0x1a0] sm:$0xff] %v1684
        %1749 = vst [vmem:[%s361 + $0x1a8] sm:$0xff] %v1685
        %1750 = vst [vmem:[%s361 + $0x1b0] sm:$0xff] %v1686
        %1751 = vst [vmem:[%s361 + $0x1b8] sm:$0xff] %v1687
        %1752 = vst [vmem:[%s361 + $0x1c0] sm:$0xff] %v1688
        %1753 = vst [vmem:[%s361 + $0x1c8] sm:$0xff] %v1689
        %1754 = vst [vmem:[%s361 + $0x1d0] sm:$0xff] %v1690
        %1755 = vst [vmem:[%s361 + $0x1d8] sm:$0xff] %v1691
        %1756 = vst [vmem:[%s361 + $0x1e0] sm:$0xff] %v1692
        %1757 = vst [vmem:[%s361 + $0x1e8] sm:$0xff] %v1693
        %1758 = vst [vmem:[%s361 + $0x1f0] sm:$0xff] %v1694
        %1759 = vst [vmem:[%s361 + $0x1f8] sm:$0xff] %v1695
        %s1760 = sand.u32 %s216, 1
        %s1761 = scalar_lea.sflag [#allocation3], %s1760
        %s1762 = sand.u32 %s216, 1
        %s1763 = smul.addr %s1762, 512
        %s1764 = scalar_lea.vmem [#allocation2], %s1763
        // Predicated region
        $region49: #{tpu_custom_call.1} parent=47 // pred_check
          %p1765 = pneg %p226
        $region50: #{tpu_custom_call.1} parent=47 // pred_check_branch
          %1767 = sbr.rel (%p1765) target = $region52
        $region51: #{tpu_custom_call.1} parent=47 // pred_region
          %s1768 = smul.u32 32, %s26
          %s1770 = ssub.s32 8192, 8192
          %1771 = vsyncadd %s1761, %s1770
          %s1772 = smul.addr %s1768, 2
          %s1773 = smul.addr %s25, 128
          %s1774 = sadd.s32 %s1772, %s1773
          %s1775 = smul.addr %s1774, 128
          %s1776 = scalar_lea.hbm %s7, %s1775
          %s1777 = sshll.u32 %s1764, 4
          %s1778 = int_to_ptr.vmem [resolvable:$true] %s1777
          %1783 = dma.vmem_to_hbm [thread:$0]  %s1778, 8192, %s1776, %s1761, 256, 256, 16
        $region52: #{tpu_custom_call.1} parent=47 // pred_fallthru
          _
      $region48: #{tpu_custom_call.1} parent=5 // pred_fallthru
        _
      %p1784 = scmp.le.s32.totalorder 2, %s16
      // Predicated region
      $region53: #{tpu_custom_call.1} parent=5 // pred_check
        %p1785 = pneg %p1784
      $region54: #{tpu_custom_call.1} parent=5 // pred_check_branch
        %1787 = sbr.rel (%p1785) target = $region56
      $region55: #{tpu_custom_call.1} parent=5 // pred_region
        %s1788 = ssub.s32 %s16, 2
        // Predicated region
        $region57: #{tpu_custom_call.1} parent=55 // pred_check
          %p1789 = pneg %p232
        $region58: #{tpu_custom_call.1} parent=55 // pred_check_branch
          %1791 = sbr.rel (%p1789) target = $region60
        $region59: #{tpu_custom_call.1} parent=55 // pred_region
          %s1792 = sand.u32 %s217, 1
          %s1793 = scalar_lea.sflag [#allocation3], %s1792
          %s1794 = sand.u32 %s217, 1
          %s1795 = smul.addr %s1794, 512
          %s1796 = scalar_lea.vmem [#allocation2], %s1795
          %1797 = dma.done %s1793, 8192
        $region60: #{tpu_custom_call.1} parent=55 // pred_fallthru
          _
      $region56: #{tpu_custom_call.1} parent=5 // pred_fallthru
        _
    $region6: #{tpu_custom_call.1} parent=1 // loop_footer
      %s20 = sadd.s32 1, %s16
    $region7: #{tpu_custom_call.1} parent=1 // loop_footer_branch
      %15 = sbr.rel target = $region3
    $region8: #{tpu_custom_call.1} parent=1 // loop_exit
      _
    %1798 = vsyncpa [#allocation3], 1
    %s1799 = scalar_lea.sflag [#allocation3], 1
    %1800 = vsyncpa %s1799, 1

</llo_original>
